<compile_context>
chip_gen: v5e
topology: v5e:2x2
jax: 0.10.0
libtpu: 0.0.40
codegen_flags: <defaults>
</compile_context>

<pallas_src>
import functools
import math

import jax
import jax.numpy as jnp
from jax.experimental import pallas as pl
from jax.experimental.pallas import tpu as pltpu


# ----------------------------- in-kernel helpers -----------------------------

def _ln(x, g, b, eps):
    """Row-wise LayerNorm over the last dim (all f32)."""
    mean = jnp.mean(x, axis=-1, keepdims=True)
    xc = x - mean
    var = jnp.mean(xc * xc, axis=-1, keepdims=True)
    return xc * jax.lax.rsqrt(var + eps) * g + b


def _gelu(x):
    # tanh-approximate GELU (EUP tanh slot).
    # TODO(synk): HF RoBERTa uses exact erf GELU; erf has no reliable Mosaic lowering.
    c = math.sqrt(2.0 / math.pi)
    return 0.5 * x * (1.0 + jnp.tanh(c * (x + 0.044715 * x * x * x)))


# ------------------------------ fused kernel ---------------------------------

def _roberta_kernel(emb_ref, mask_ref, eg_ref, eb_ref,
                    qkvw_ref, qkvb_ref, ow_ref, ob_ref, g1_ref, b1_ref,
                    iw_ref, ib_ref, fw_ref, fb_ref, g2_ref, b2_ref,
                    pw_ref, pb_ref, cw_ref, cb_ref,
                    out_ref, h_ref, *, B, S, nh, eps):
    """One grid step == one encoder layer.  h_ref is the VMEM residual carry."""
    l = pl.program_id(0)
    M, H = h_ref.shape                      # M = B*S
    dh = H // nh
    scale = 1.0 / math.sqrt(dh)

    # --- grid step 0: fused embedding LayerNorm into the carry ---------------
    @pl.when(l == 0)
    def _():
        h_ref[...] = _ln(emb_ref[...], eg_ref[...], eb_ref[...], eps)

    x = h_ref[...]                          # [M, H] f32 residual stream
    x16 = x.astype(jnp.bfloat16)

    # --- fused QKV: one [M, H] @ [H, 3H] MXU matmul ---------------------------
    qkv = jnp.dot(x16, qkvw_ref[0],
                  preferred_element_type=jnp.float32) + qkvb_ref[0]   # [M, 3H] f32

    def split_heads(off):
        # Per-head lane slice -> (nh*B, S, dh).  (A single layout-aware
        # transpose would be cheaper, but general (s,h*d)->(h,s,d) transposes
        # are not reliably lowered by Mosaic, so keep the supported form.)
        cols = [qkv[:, off + i * dh: off + (i + 1) * dh].reshape(B, S, dh)
                for i in range(nh)]
        return jnp.stack(cols, axis=0).reshape(nh * B, S, dh)

    qh = (split_heads(0) * scale).astype(jnp.bfloat16)   # scale folded into Q
    kh = split_heads(H).astype(jnp.bfloat16)
    vh = split_heads(2 * H).astype(jnp.bfloat16)

    # --- all heads & batches in one batched attention (f32 softmax) ----------
    s = jnp.einsum('bqd,bkd->bqk', qh, kh,
                   preferred_element_type=jnp.float32)               # [nh*B, S, S]
    s = s + mask_ref[...]                                            # additive mask
    s = s - jnp.max(s, axis=-1, keepdims=True)
    p = jnp.exp(s)
    p = p * pl.reciprocal(jnp.sum(p, axis=-1, keepdims=True), approx=True)
    ctx = jnp.einsum('bqk,bkd->bqd', p.astype(jnp.bfloat16), vh,
                     preferred_element_type=jnp.float32)             # [nh*B, S, dh]

    # --- output projection folded over heads (no lane-axis concat) -----------
    ctx = ctx.reshape(nh, M, dh).astype(jnp.bfloat16)
    attn = jnp.einsum('hmd,hdn->hmn', ctx, ow_ref[0],
                      preferred_element_type=jnp.float32).sum(axis=0) + ob_ref[0]

    x1 = _ln(attn + x, g1_ref[0], b1_ref[0], eps)

    # --- FFN (gelu) + residual + LN2 ------------------------------------------
    inter = _gelu(jnp.dot(x1.astype(jnp.bfloat16), iw_ref[0],
                          preferred_element_type=jnp.float32) + ib_ref[0])
    ffn = jnp.dot(inter.astype(jnp.bfloat16), fw_ref[0],
                  preferred_element_type=jnp.float32) + fb_ref[0]
    x2 = _ln(ffn + x1, g2_ref[0], b2_ref[0], eps)
    h_ref[...] = x2

    # --- last layer: fused pooler (tanh on CLS) + classifier ------------------
    @pl.when(l == pl.num_programs(0) - 1)
    def _():
        cls = x2.reshape(B, S, H)[:, 0, :]                           # [B, H] CLS rows
        pooled = jnp.tanh(jnp.dot(cls.astype(jnp.bfloat16), pw_ref[...],
                                  preferred_element_type=jnp.float32) + pb_ref[...])
        # classifier: Identity -> Dropout(p=0.1) -> Linear
        # TODO(synk): Dropout is identity at inference; stochastic dropout not implemented.
        out_ref[...] = (jnp.dot(pooled.astype(jnp.bfloat16), cw_ref[...],
                                preferred_element_type=jnp.float32) + cb_ref[...])


# --------------------------- parameter construction ---------------------------

def init_params(key, cfg):
    H, I, L, C = cfg["hidden"], cfg["intermediate"], cfg["layers"], cfg["num_classes"]
    nh = cfg["heads"]
    dh = H // nh

    def nrm(k, shape):
        return 0.02 * jax.random.normal(k, shape, jnp.float32)

    keys = iter(jax.random.split(key, 8 + 4 * L))
    p = {
        "word_emb": nrm(next(keys), (cfg["vocab"], H)),
        "pos_emb": nrm(next(keys), (cfg["max_pos"], H)),
        "type_emb": nrm(next(keys), (cfg["type_vocab"], H)),
        "emb_ln_g": jnp.ones((1, H), jnp.float32),
        "emb_ln_b": jnp.zeros((1, H), jnp.float32),
        # pooler / classifier weights (bf16 for the MXU path, f32 biases)
        "pool_w": nrm(next(keys), (H, H)).astype(jnp.bfloat16),
        "pool_b": jnp.zeros((1, H), jnp.float32),
        "cls_w": nrm(next(keys), (H, C)).astype(jnp.bfloat16),
        "cls_b": jnp.zeros((1, C), jnp.float32),
    }
    qkv_w, o_w, i_w, f_w = [], [], [], []
    for _ in range(L):
        qkv_w.append(nrm(next(keys), (H, 3 * H)))            # [Wq | Wk | Wv]
        o_w.append(nrm(next(keys), (H, H)).reshape(nh, dh, H))  # per-head row blocks
        i_w.append(nrm(next(keys), (H, I)))
        f_w.append(nrm(next(keys), (I, H)))
    # Per-layer weights stacked on a leading L axis (pipeline-prefetched).
    p["qkv_w"] = jnp.stack(qkv_w).astype(jnp.bfloat16)        # [L, H, 3H]
    p["qkv_b"] = jnp.zeros((L, 1, 3 * H), jnp.float32)
    p["o_w"] = jnp.stack(o_w).astype(jnp.bfloat16)            # [L, nh, dh, H]
    p["o_b"] = jnp.zeros((L, 1, H), jnp.float32)
    p["ln1_g"] = jnp.ones((L, 1, H), jnp.float32)
    p["ln1_b"] = jnp.zeros((L, 1, H), jnp.float32)
    p["i_w"] = jnp.stack(i_w).astype(jnp.bfloat16)            # [L, H, I]
    p["i_b"] = jnp.zeros((L, 1, I), jnp.float32)
    p["f_w"] = jnp.stack(f_w).astype(jnp.bfloat16)            # [L, I, H]
    p["f_b"] = jnp.zeros((L, 1, H), jnp.float32)
    p["ln2_g"] = jnp.ones((L, 1, H), jnp.float32)
    p["ln2_b"] = jnp.zeros((L, 1, H), jnp.float32)
    return p


# ------------------------------- forward pass ---------------------------------

def roberta_forward(params, input_ids, attention_mask, cfg):
    B, S = input_ids.shape
    H, I, L = cfg["hidden"], cfg["intermediate"], cfg["layers"]
    nh, C = cfg["heads"], cfg["num_classes"]
    dh = H // nh
    pad, eps = cfg["pad_token_id"], cfg["eps"]

    # Embedding gathers stay in plain JAX (data-dependent row gather).
    mask_i = attention_mask.astype(jnp.int32)
    position_ids = jnp.cumsum(mask_i, axis=1) * mask_i + pad      # RoBERTa position ids
    emb = (params["word_emb"][input_ids]
           + params["pos_emb"][position_ids]
           + params["type_emb"][jnp.zeros_like(input_ids)])
    emb = emb.reshape(B * S, H).astype(jnp.float32)

    # Additive attention mask, pre-tiled over heads once here (tiny tensor).
    amask = (1.0 - attention_mask.astype(jnp.float32)).reshape(B, 1, S) * (-1e9)
    amask = jnp.tile(amask, (nh, 1, 1))                           # [nh*B, 1, S]

    kernel = functools.partial(_roberta_kernel, B=B, S=S, nh=nh, eps=eps)

    grid_spec = pltpu.PrefetchScalarGridSpec(
        num_scalar_prefetch=0,
        grid=(L,),
        in_specs=[
            pl.BlockSpec((B * S, H), lambda l: (0, 0)),            # embeddings
            pl.BlockSpec((nh * B, 1, S), lambda l: (0, 0, 0)),     # additive mask
            pl.BlockSpec((1, H), lambda l: (0, 0)),                # emb LN gamma
            pl.BlockSpec((1, H), lambda l: (0, 0)),                # emb LN beta
            pl.BlockSpec((1, H, 3 * H), lambda l: (l, 0, 0)),      # qkv_w (bf16)
            pl.BlockSpec((1, 1, 3 * H), lambda l: (l, 0, 0)),      # qkv_b
            pl.BlockSpec((1, nh, dh, H), lambda l: (l, 0, 0, 0)),  # o_w per-head (bf16)
            pl.BlockSpec((1, 1, H), lambda l: (l, 0, 0)),          # o_b
            pl.BlockSpec((1, 1, H), lambda l: (l, 0, 0)),          # ln1_g
            pl.BlockSpec((1, 1, H), lambda l: (l, 0, 0)),          # ln1_b
            pl.BlockSpec((1, H, I), lambda l: (l, 0, 0)),          # i_w (bf16)
            pl.BlockSpec((1, 1, I), lambda l: (l, 0, 0)),          # i_b
            pl.BlockSpec((1, I, H), lambda l: (l, 0, 0)),          # f_w (bf16)
            pl.BlockSpec((1, 1, H), lambda l: (l, 0, 0)),          # f_b
            pl.BlockSpec((1, 1, H), lambda l: (l, 0, 0)),          # ln2_g
            pl.BlockSpec((1, 1, H), lambda l: (l, 0, 0)),          # ln2_b
            pl.BlockSpec((H, H), lambda l: (0, 0)),                # pool_w (bf16)
            pl.BlockSpec((1, H), lambda l: (0, 0)),                # pool_b
            pl.BlockSpec((H, C), lambda l: (0, 0)),                # cls_w (bf16)
            pl.BlockSpec((1, C), lambda l: (0, 0)),                # cls_b
        ],
        out_specs=pl.BlockSpec((B, C), lambda l: (0, 0)),
        scratch_shapes=[pltpu.VMEM((B * S, H), jnp.float32)],      # residual carry
    )

    logits = pl.pallas_call(
        kernel,
        out_shape=jax.ShapeDtypeStruct((B, C), jnp.float32),
        grid_spec=grid_spec,
        compiler_params=pltpu.CompilerParams(
            # Layer axis carries the residual stream -> strictly sequential.
            dimension_semantics=("arbitrary",),
            # Raised scoped-VMEM limit (still fits v7x's 64 MiB physical VMEM
            # with bf16 weights when scaled to real RoBERTa sizes).
            vmem_limit_bytes=64 * 1024 * 1024),
    )(emb, amask,
      params["emb_ln_g"], params["emb_ln_b"],
      params["qkv_w"], params["qkv_b"], params["o_w"], params["o_b"],
      params["ln1_g"], params["ln1_b"],
      params["i_w"], params["i_b"], params["f_w"], params["f_b"],
      params["ln2_g"], params["ln2_b"],
      params["pool_w"], params["pool_b"], params["cls_w"], params["cls_b"])
    return logits


# ----------------------------------- main --------------------------------------

if __name__ == "__main__":
    cfg = dict(vocab=100, hidden=32, layers=2, heads=4, intermediate=64,
               max_pos=64, type_vocab=1, num_classes=2, pad_token_id=1, eps=1e-5)
    B, S = 2, 8

    key = jax.random.PRNGKey(0)
    pkey, ikey = jax.random.split(key)
    params = init_params(pkey, cfg)

    input_ids = jax.random.randint(ikey, (B, S), 3, cfg["vocab"], dtype=jnp.int32)
    attention_mask = jnp.array([[1, 1, 1, 1, 1, 1, 1, 1],
                                [1, 1, 1, 1, 1, 1, 0, 0]], dtype=jnp.int32)
    # zero out padded tokens (set to pad id), as a tokenizer would
    input_ids = jnp.where(attention_mask == 1, input_ids, cfg["pad_token_id"])

    logits = roberta_forward(params, input_ids, attention_mask, cfg)
    logits = jax.block_until_ready(logits)
    assert logits.shape == (B, cfg["num_classes"]) and logits.dtype == jnp.float32
    assert bool(jnp.all(jnp.isfinite(logits)))
    print("KERNEL_OK")
</pallas_src>

<mosaic_0001>
module attributes {stable_mosaic.version = 11 : i64} {
  func.func @_roberta_kernel(%arg0: i32, %arg1: memref<16x32xf32, #tpu.memory_space<vmem>>, %arg2: memref<8x1x8xf32, #tpu.memory_space<vmem>>, %arg3: memref<1x32xf32, #tpu.memory_space<vmem>>, %arg4: memref<1x32xf32, #tpu.memory_space<vmem>>, %arg5: memref<1x32x96xbf16, #tpu.memory_space<vmem>>, %arg6: memref<1x1x96xf32, #tpu.memory_space<vmem>>, %arg7: memref<1x4x8x32xbf16, #tpu.memory_space<vmem>>, %arg8: memref<1x1x32xf32, #tpu.memory_space<vmem>>, %arg9: memref<1x1x32xf32, #tpu.memory_space<vmem>>, %arg10: memref<1x1x32xf32, #tpu.memory_space<vmem>>, %arg11: memref<1x32x64xbf16, #tpu.memory_space<vmem>>, %arg12: memref<1x1x64xf32, #tpu.memory_space<vmem>>, %arg13: memref<1x64x32xbf16, #tpu.memory_space<vmem>>, %arg14: memref<1x1x32xf32, #tpu.memory_space<vmem>>, %arg15: memref<1x1x32xf32, #tpu.memory_space<vmem>>, %arg16: memref<1x1x32xf32, #tpu.memory_space<vmem>>, %arg17: memref<32x32xbf16, #tpu.memory_space<vmem>>, %arg18: memref<1x32xf32, #tpu.memory_space<vmem>>, %arg19: memref<32x2xbf16, #tpu.memory_space<vmem>>, %arg20: memref<1x2xf32, #tpu.memory_space<vmem>>, %arg21: memref<2x2xf32, #tpu.memory_space<vmem>>, %arg22: memref<16x32xf32, #tpu.memory_space<vmem>>) attributes {dimension_semantics = [#tpu.dimension_semantics<arbitrary>], iteration_bounds = array<i64: 2>, scalar_prefetch = 0 : i64, scratch_operands = 1 : i64, tpu.core_type = #tpu.core_type<tc>, window_params = [{pipeline_mode = #tpu.pipeline_mode<synchronous>, transform_indices = @transform_0, window_bounds = array<i64: 16, 32>}, {pipeline_mode = #tpu.pipeline_mode<synchronous>, transform_indices = @transform_1, window_bounds = array<i64: 8, 1, 8>}, {pipeline_mode = #tpu.pipeline_mode<synchronous>, transform_indices = @transform_2, window_bounds = array<i64: 1, 32>}, {pipeline_mode = #tpu.pipeline_mode<synchronous>, transform_indices = @transform_3, window_bounds = array<i64: 1, 32>}, {transform_indices = @transform_4, window_bounds = array<i64: 1, 32, 96>}, {transform_indices = @transform_5, window_bounds = array<i64: 1, 1, 96>}, {transform_indices = @transform_6, window_bounds = array<i64: 1, 4, 8, 32>}, {transform_indices = @transform_7, window_bounds = array<i64: 1, 1, 32>}, {transform_indices = @transform_8, window_bounds = array<i64: 1, 1, 32>}, {transform_indices = @transform_9, window_bounds = array<i64: 1, 1, 32>}, {transform_indices = @transform_10, window_bounds = array<i64: 1, 32, 64>}, {transform_indices = @transform_11, window_bounds = array<i64: 1, 1, 64>}, {transform_indices = @transform_12, window_bounds = array<i64: 1, 64, 32>}, {transform_indices = @transform_13, window_bounds = array<i64: 1, 1, 32>}, {transform_indices = @transform_14, window_bounds = array<i64: 1, 1, 32>}, {transform_indices = @transform_15, window_bounds = array<i64: 1, 1, 32>}, {pipeline_mode = #tpu.pipeline_mode<synchronous>, transform_indices = @transform_16, window_bounds = array<i64: 32, 32>}, {pipeline_mode = #tpu.pipeline_mode<synchronous>, transform_indices = @transform_17, window_bounds = array<i64: 1, 32>}, {pipeline_mode = #tpu.pipeline_mode<synchronous>, transform_indices = @transform_18, window_bounds = array<i64: 32, 2>}, {pipeline_mode = #tpu.pipeline_mode<synchronous>, transform_indices = @transform_19, window_bounds = array<i64: 1, 2>}, {pipeline_mode = #tpu.pipeline_mode<synchronous>, transform_indices = @transform_20, window_bounds = array<i64: 2, 2>}]} {
    %c0_i32 = arith.constant 0 : i32
    %0 = arith.cmpi eq, %arg0, %c0_i32 : i32
    %1 = arith.extui %0 : i1 to i32
    %c0_i32_0 = arith.constant 0 : i32
    %2 = arith.cmpi ne, %1, %c0_i32_0 : i32
    scf.if %2 {
      %c0_68 = arith.constant 0 : index
      %c0_69 = arith.constant 0 : index
      %168 = vector.load %arg1[%c0_68, %c0_69] : memref<16x32xf32, #tpu.memory_space<vmem>>, vector<16x32xf32>
      %c0_70 = arith.constant 0 : index
      %c0_71 = arith.constant 0 : index
      %169 = vector.load %arg3[%c0_70, %c0_71] : memref<1x32xf32, #tpu.memory_space<vmem>>, vector<1x32xf32>
      %c0_72 = arith.constant 0 : index
      %c0_73 = arith.constant 0 : index
      %170 = vector.load %arg4[%c0_72, %c0_73] : memref<1x32xf32, #tpu.memory_space<vmem>>, vector<1x32xf32>
      %cst_74 = arith.constant dense<0.000000e+00> : vector<16xf32>
      %171 = vector.multi_reduction <add>, %168, %cst_74 [1] : vector<16x32xf32> to vector<16xf32>
      %172 = vector.shape_cast %171 : vector<16xf32> to vector<16x1xf32>
      %cst_75 = arith.constant 3.200000e+01 : f32
      %173 = vector.broadcast %cst_75 : f32 to vector<16x1xf32>
      %174 = arith.divf %172, %173 : vector<16x1xf32>
      %175 = vector.broadcast %174 : vector<16x1xf32> to vector<16x32xf32>
      %176 = arith.subf %168, %175 : vector<16x32xf32>
      %177 = arith.mulf %176, %176 : vector<16x32xf32>
      %cst_76 = arith.constant dense<0.000000e+00> : vector<16xf32>
      %178 = vector.multi_reduction <add>, %177, %cst_76 [1] : vector<16x32xf32> to vector<16xf32>
      %179 = vector.shape_cast %178 : vector<16xf32> to vector<16x1xf32>
      %cst_77 = arith.constant 3.200000e+01 : f32
      %180 = vector.broadcast %cst_77 : f32 to vector<16x1xf32>
      %181 = arith.divf %179, %180 : vector<16x1xf32>
      %cst_78 = arith.constant 9.99999974E-6 : f32
      %182 = vector.broadcast %cst_78 : f32 to vector<16x1xf32>
      %183 = arith.addf %181, %182 : vector<16x1xf32>
      %184 = math.rsqrt %183 : vector<16x1xf32>
      %185 = vector.broadcast %184 : vector<16x1xf32> to vector<16x32xf32>
      %186 = arith.mulf %176, %185 : vector<16x32xf32>
      %187 = vector.broadcast %169 : vector<1x32xf32> to vector<16x32xf32>
      %188 = arith.mulf %186, %187 : vector<16x32xf32>
      %189 = vector.broadcast %170 : vector<1x32xf32> to vector<16x32xf32>
      %190 = arith.addf %188, %189 : vector<16x32xf32>
      %c0_79 = arith.constant 0 : index
      %c0_80 = arith.constant 0 : index
      %191 = vector.load %arg22[%c0_79, %c0_80] : memref<16x32xf32, #tpu.memory_space<vmem>>, vector<16x32xf32>
      tpu.vector_store %arg22[%c0_79, %c0_80], %190 {strides = array<i32>} : memref<16x32xf32, #tpu.memory_space<vmem>>, vector<16x32xf32>,
    } else {
    }
    %c0 = arith.constant 0 : index
    %c0_1 = arith.constant 0 : index
    %3 = vector.load %arg22[%c0, %c0_1] : memref<16x32xf32, #tpu.memory_space<vmem>>, vector<16x32xf32>
    %4 = arith.truncf %3 : vector<16x32xf32> to vector<16x32xbf16>
    %c0_2 = arith.constant 0 : index
    %c0_3 = arith.constant 0 : index
    %c0_4 = arith.constant 0 : index
    %5 = vector.load %arg5[%c0_2, %c0_3, %c0_4] : memref<1x32x96xbf16, #tpu.memory_space<vmem>>, vector<1x32x96xbf16>
    %6 = vector.shape_cast %5 : vector<1x32x96xbf16> to vector<32x96xbf16>
    %cst = arith.constant dense<0.000000e+00> : vector<16x96xf32>
    %7 = tpu.matmul %4, %6, %cst {dimension_numbers = #tpu.dot_dimension_numbers<[1], [0], [0], [1], [0, 0, 1, 1], [], []>} : vector<16x32xbf16>, vector<32x96xbf16>, vector<16x96xf32> -> vector<16x96xf32>
    %c0_5 = arith.constant 0 : index
    %c0_6 = arith.constant 0 : index
    %c0_7 = arith.constant 0 : index
    %8 = vector.load %arg6[%c0_5, %c0_6, %c0_7] : memref<1x1x96xf32, #tpu.memory_space<vmem>>, vector<1x1x96xf32>
    %9 = vector.shape_cast %8 : vector<1x1x96xf32> to vector<1x96xf32>
    %10 = vector.broadcast %9 : vector<1x96xf32> to vector<16x96xf32>
    %11 = arith.addf %7, %10 : vector<16x96xf32>
    %12 = vector.extract_strided_slice %11 {offsets = [0, 0], sizes = [16, 8], strides = [1, 1]} : vector<16x96xf32> to vector<16x8xf32>
    %13 = vector.shape_cast %12 : vector<16x8xf32> to vector<2x8x8xf32>
    %14 = vector.extract_strided_slice %11 {offsets = [0, 8], sizes = [16, 8], strides = [1, 1]} : vector<16x96xf32> to vector<16x8xf32>
    %15 = vector.shape_cast %14 : vector<16x8xf32> to vector<2x8x8xf32>
    %16 = vector.extract_strided_slice %11 {offsets = [0, 16], sizes = [16, 8], strides = [1, 1]} : vector<16x96xf32> to vector<16x8xf32>
    %17 = vector.shape_cast %16 : vector<16x8xf32> to vector<2x8x8xf32>
    %18 = vector.extract_strided_slice %11 {offsets = [0, 24], sizes = [16, 8], strides = [1, 1]} : vector<16x96xf32> to vector<16x8xf32>
    %19 = vector.shape_cast %18 : vector<16x8xf32> to vector<2x8x8xf32>
    %20 = vector.shape_cast %13 : vector<2x8x8xf32> to vector<1x2x8x8xf32>
    %21 = vector.shape_cast %15 : vector<2x8x8xf32> to vector<1x2x8x8xf32>
    %22 = vector.shape_cast %17 : vector<2x8x8xf32> to vector<1x2x8x8xf32>
    %23 = vector.shape_cast %19 : vector<2x8x8xf32> to vector<1x2x8x8xf32>
    %24 = tpu.concatenate %20, %21, %22, %23 in 0 : vector<1x2x8x8xf32>, vector<1x2x8x8xf32>, vector<1x2x8x8xf32>, vector<1x2x8x8xf32> -> vector<4x2x8x8xf32>
    %25 = vector.shape_cast %24 : vector<4x2x8x8xf32> to vector<8x8x8xf32>
    %cst_8 = arith.constant 0.353553385 : f32
    %26 = vector.broadcast %cst_8 : f32 to vector<8x8x8xf32>
    %27 = arith.mulf %25, %26 : vector<8x8x8xf32>
    %28 = arith.truncf %27 : vector<8x8x8xf32> to vector<8x8x8xbf16>
    %29 = vector.extract_strided_slice %11 {offsets = [0, 32], sizes = [16, 8], strides = [1, 1]} : vector<16x96xf32> to vector<16x8xf32>
    %30 = vector.shape_cast %29 : vector<16x8xf32> to vector<2x8x8xf32>
    %31 = vector.extract_strided_slice %11 {offsets = [0, 40], sizes = [16, 8], strides = [1, 1]} : vector<16x96xf32> to vector<16x8xf32>
    %32 = vector.shape_cast %31 : vector<16x8xf32> to vector<2x8x8xf32>
    %33 = vector.extract_strided_slice %11 {offsets = [0, 48], sizes = [16, 8], strides = [1, 1]} : vector<16x96xf32> to vector<16x8xf32>
    %34 = vector.shape_cast %33 : vector<16x8xf32> to vector<2x8x8xf32>
    %35 = vector.extract_strided_slice %11 {offsets = [0, 56], sizes = [16, 8], strides = [1, 1]} : vector<16x96xf32> to vector<16x8xf32>
    %36 = vector.shape_cast %35 : vector<16x8xf32> to vector<2x8x8xf32>
    %37 = vector.shape_cast %30 : vector<2x8x8xf32> to vector<1x2x8x8xf32>
    %38 = vector.shape_cast %32 : vector<2x8x8xf32> to vector<1x2x8x8xf32>
    %39 = vector.shape_cast %34 : vector<2x8x8xf32> to vector<1x2x8x8xf32>
    %40 = vector.shape_cast %36 : vector<2x8x8xf32> to vector<1x2x8x8xf32>
    %41 = tpu.concatenate %37, %38, %39, %40 in 0 : vector<1x2x8x8xf32>, vector<1x2x8x8xf32>, vector<1x2x8x8xf32>, vector<1x2x8x8xf32> -> vector<4x2x8x8xf32>
    %42 = vector.shape_cast %41 : vector<4x2x8x8xf32> to vector<8x8x8xf32>
    %43 = arith.truncf %42 : vector<8x8x8xf32> to vector<8x8x8xbf16>
    %44 = vector.extract_strided_slice %11 {offsets = [0, 64], sizes = [16, 8], strides = [1, 1]} : vector<16x96xf32> to vector<16x8xf32>
    %45 = vector.shape_cast %44 : vector<16x8xf32> to vector<2x8x8xf32>
    %46 = vector.extract_strided_slice %11 {offsets = [0, 72], sizes = [16, 8], strides = [1, 1]} : vector<16x96xf32> to vector<16x8xf32>
    %47 = vector.shape_cast %46 : vector<16x8xf32> to vector<2x8x8xf32>
    %48 = vector.extract_strided_slice %11 {offsets = [0, 80], sizes = [16, 8], strides = [1, 1]} : vector<16x96xf32> to vector<16x8xf32>
    %49 = vector.shape_cast %48 : vector<16x8xf32> to vector<2x8x8xf32>
    %50 = vector.extract_strided_slice %11 {offsets = [0, 88], sizes = [16, 8], strides = [1, 1]} : vector<16x96xf32> to vector<16x8xf32>
    %51 = vector.shape_cast %50 : vector<16x8xf32> to vector<2x8x8xf32>
    %52 = vector.shape_cast %45 : vector<2x8x8xf32> to vector<1x2x8x8xf32>
    %53 = vector.shape_cast %47 : vector<2x8x8xf32> to vector<1x2x8x8xf32>
    %54 = vector.shape_cast %49 : vector<2x8x8xf32> to vector<1x2x8x8xf32>
    %55 = vector.shape_cast %51 : vector<2x8x8xf32> to vector<1x2x8x8xf32>
    %56 = tpu.concatenate %52, %53, %54, %55 in 0 : vector<1x2x8x8xf32>, vector<1x2x8x8xf32>, vector<1x2x8x8xf32>, vector<1x2x8x8xf32> -> vector<4x2x8x8xf32>
    %57 = vector.shape_cast %56 : vector<4x2x8x8xf32> to vector<8x8x8xf32>
    %58 = arith.truncf %57 : vector<8x8x8xf32> to vector<8x8x8xbf16>
    "tpu.trace_start"() <{level = 10 : i32, message = "bqd,bkd->bqk"}> : () -> ()
    %cst_9 = arith.constant dense<0.000000e+00> : vector<8x8x8xf32>
    %59 = tpu.matmul %28, %43, %cst_9 {dimension_numbers = #tpu.dot_dimension_numbers<[2], [2], [1], [1], [0, 0, 0, 1, 1, 1], [0], [0]>} : vector<8x8x8xbf16>, vector<8x8x8xbf16>, vector<8x8x8xf32> -> vector<8x8x8xf32>
    "tpu.trace_stop"() : () -> ()
    %c0_10 = arith.constant 0 : index
    %c0_11 = arith.constant 0 : index
    %c0_12 = arith.constant 0 : index
    %60 = vector.load %arg2[%c0_10, %c0_11, %c0_12] : memref<8x1x8xf32, #tpu.memory_space<vmem>>, vector<8x1x8xf32>
    %61 = vector.broadcast %60 : vector<8x1x8xf32> to vector<8x8x8xf32>
    %62 = arith.addf %59, %61 : vector<8x8x8xf32>
    %cst_13 = arith.constant dense<0xFF800000> : vector<8x8xf32>
    %63 = vector.multi_reduction <maximumf>, %62, %cst_13 [2] : vector<8x8x8xf32> to vector<8x8xf32>
    %64 = vector.shape_cast %63 : vector<8x8xf32> to vector<8x8x1xf32>
    %65 = vector.broadcast %64 : vector<8x8x1xf32> to vector<8x8x8xf32>
    %66 = arith.subf %62, %65 : vector<8x8x8xf32>
    %67 = math.exp %66 : vector<8x8x8xf32>
    %cst_14 = arith.constant dense<0.000000e+00> : vector<8x8xf32>
    %68 = vector.multi_reduction <add>, %67, %cst_14 [2] : vector<8x8x8xf32> to vector<8x8xf32>
    %69 = vector.shape_cast %68 : vector<8x8xf32> to vector<8x8x1xf32>
    %70 = tpu.reciprocal %69 {approx = true} : vector<8x8x1xf32> -> vector<8x8x1xf32>
    %71 = vector.broadcast %70 : vector<8x8x1xf32> to vector<8x8x8xf32>
    %72 = arith.mulf %67, %71 : vector<8x8x8xf32>
    %73 = arith.truncf %72 : vector<8x8x8xf32> to vector<8x8x8xbf16>
    "tpu.trace_start"() <{level = 10 : i32, message = "bqk,bkd->bqd"}> : () -> ()
    %cst_15 = arith.constant dense<0.000000e+00> : vector<8x8x8xf32>
    %74 = tpu.matmul %73, %58, %cst_15 {dimension_numbers = #tpu.dot_dimension_numbers<[2], [1], [1], [2], [0, 0, 0, 1, 1, 2], [0], [0]>} : vector<8x8x8xbf16>, vector<8x8x8xbf16>, vector<8x8x8xf32> -> vector<8x8x8xf32>
    "tpu.trace_stop"() : () -> ()
    %75 = vector.shape_cast %74 : vector<8x8x8xf32> to vector<4x16x8xf32>
    %76 = arith.truncf %75 : vector<4x16x8xf32> to vector<4x16x8xbf16>
    %c0_16 = arith.constant 0 : index
    %c0_17 = arith.constant 0 : index
    %c0_18 = arith.constant 0 : index
    %c0_19 = arith.constant 0 : index
    %77 = vector.load %arg7[%c0_16, %c0_17, %c0_18, %c0_19] : memref<1x4x8x32xbf16, #tpu.memory_space<vmem>>, vector<1x4x8x32xbf16>
    %78 = vector.shape_cast %77 : vector<1x4x8x32xbf16> to vector<4x8x32xbf16>
    "tpu.trace_start"() <{level = 10 : i32, message = "hmd,hdn->hmn"}> : () -> ()
    %cst_20 = arith.constant dense<0.000000e+00> : vector<4x16x32xf32>
    %79 = tpu.matmul %76, %78, %cst_20 {dimension_numbers = #tpu.dot_dimension_numbers<[2], [1], [1], [2], [0, 0, 0, 1, 1, 2], [0], [0]>} : vector<4x16x8xbf16>, vector<4x8x32xbf16>, vector<4x16x32xf32> -> vector<4x16x32xf32>
    "tpu.trace_stop"() : () -> ()
    %cst_21 = arith.constant dense<0.000000e+00> : vector<16x32xf32>
    %80 = vector.multi_reduction <add>, %79, %cst_21 [0] : vector<4x16x32xf32> to vector<16x32xf32>
    %c0_22 = arith.constant 0 : index
    %c0_23 = arith.constant 0 : index
    %c0_24 = arith.constant 0 : index
    %81 = vector.load %arg8[%c0_22, %c0_23, %c0_24] : memref<1x1x32xf32, #tpu.memory_space<vmem>>, vector<1x1x32xf32>
    %82 = vector.shape_cast %81 : vector<1x1x32xf32> to vector<1x32xf32>
    %83 = vector.broadcast %82 : vector<1x32xf32> to vector<16x32xf32>
    %84 = arith.addf %80, %83 : vector<16x32xf32>
    %85 = arith.addf %84, %3 : vector<16x32xf32>
    %c0_25 = arith.constant 0 : index
    %c0_26 = arith.constant 0 : index
    %c0_27 = arith.constant 0 : index
    %86 = vector.load %arg9[%c0_25, %c0_26, %c0_27] : memref<1x1x32xf32, #tpu.memory_space<vmem>>, vector<1x1x32xf32>
    %87 = vector.shape_cast %86 : vector<1x1x32xf32> to vector<1x32xf32>
    %c0_28 = arith.constant 0 : index
    %c0_29 = arith.constant 0 : index
    %c0_30 = arith.constant 0 : index
    %88 = vector.load %arg10[%c0_28, %c0_29, %c0_30] : memref<1x1x32xf32, #tpu.memory_space<vmem>>, vector<1x1x32xf32>
    %89 = vector.shape_cast %88 : vector<1x1x32xf32> to vector<1x32xf32>
    %cst_31 = arith.constant dense<0.000000e+00> : vector<16xf32>
    %90 = vector.multi_reduction <add>, %85, %cst_31 [1] : vector<16x32xf32> to vector<16xf32>
    %91 = vector.shape_cast %90 : vector<16xf32> to vector<16x1xf32>
    %cst_32 = arith.constant 3.200000e+01 : f32
    %92 = vector.broadcast %cst_32 : f32 to vector<16x1xf32>
    %93 = arith.divf %91, %92 : vector<16x1xf32>
    %94 = vector.broadcast %93 : vector<16x1xf32> to vector<16x32xf32>
    %95 = arith.subf %85, %94 : vector<16x32xf32>
    %96 = arith.mulf %95, %95 : vector<16x32xf32>
    %cst_33 = arith.constant dense<0.000000e+00> : vector<16xf32>
    %97 = vector.multi_reduction <add>, %96, %cst_33 [1] : vector<16x32xf32> to vector<16xf32>
    %98 = vector.shape_cast %97 : vector<16xf32> to vector<16x1xf32>
    %cst_34 = arith.constant 3.200000e+01 : f32
    %99 = vector.broadcast %cst_34 : f32 to vector<16x1xf32>
    %100 = arith.divf %98, %99 : vector<16x1xf32>
    %cst_35 = arith.constant 9.99999974E-6 : f32
    %101 = vector.broadcast %cst_35 : f32 to vector<16x1xf32>
    %102 = arith.addf %100, %101 : vector<16x1xf32>
    %103 = math.rsqrt %102 : vector<16x1xf32>
    %104 = vector.broadcast %103 : vector<16x1xf32> to vector<16x32xf32>
    %105 = arith.mulf %95, %104 : vector<16x32xf32>
    %106 = vector.broadcast %87 : vector<1x32xf32> to vector<16x32xf32>
    %107 = arith.mulf %105, %106 : vector<16x32xf32>
    %108 = vector.broadcast %89 : vector<1x32xf32> to vector<16x32xf32>
    %109 = arith.addf %107, %108 : vector<16x32xf32>
    %110 = arith.truncf %109 : vector<16x32xf32> to vector<16x32xbf16>
    %c0_36 = arith.constant 0 : index
    %c0_37 = arith.constant 0 : index
    %c0_38 = arith.constant 0 : index
    %111 = vector.load %arg11[%c0_36, %c0_37, %c0_38] : memref<1x32x64xbf16, #tpu.memory_space<vmem>>, vector<1x32x64xbf16>
    %112 = vector.shape_cast %111 : vector<1x32x64xbf16> to vector<32x64xbf16>
    %cst_39 = arith.constant dense<0.000000e+00> : vector<16x64xf32>
    %113 = tpu.matmul %110, %112, %cst_39 {dimension_numbers = #tpu.dot_dimension_numbers<[1], [0], [0], [1], [0, 0, 1, 1], [], []>} : vector<16x32xbf16>, vector<32x64xbf16>, vector<16x64xf32> -> vector<16x64xf32>
    %c0_40 = arith.constant 0 : index
    %c0_41 = arith.constant 0 : index
    %c0_42 = arith.constant 0 : index
    %114 = vector.load %arg12[%c0_40, %c0_41, %c0_42] : memref<1x1x64xf32, #tpu.memory_space<vmem>>, vector<1x1x64xf32>
    %115 = vector.shape_cast %114 : vector<1x1x64xf32> to vector<1x64xf32>
    %116 = vector.broadcast %115 : vector<1x64xf32> to vector<16x64xf32>
    %117 = arith.addf %113, %116 : vector<16x64xf32>
    %cst_43 = arith.constant 5.000000e-01 : f32
    %118 = vector.broadcast %cst_43 : f32 to vector<16x64xf32>
    %119 = arith.mulf %118, %117 : vector<16x64xf32>
    %cst_44 = arith.constant 4.471500e-02 : f32
    %120 = vector.broadcast %cst_44 : f32 to vector<16x64xf32>
    %121 = arith.mulf %120, %117 : vector<16x64xf32>
    %122 = arith.mulf %121, %117 : vector<16x64xf32>
    %123 = arith.mulf %122, %117 : vector<16x64xf32>
    %124 = arith.addf %117, %123 : vector<16x64xf32>
    %cst_45 = arith.constant 0.797884583 : f32
    %125 = vector.broadcast %cst_45 : f32 to vector<16x64xf32>
    %126 = arith.mulf %125, %124 : vector<16x64xf32>
    %127 = math.tanh %126 : vector<16x64xf32>
    %cst_46 = arith.constant 1.000000e+00 : f32
    %128 = vector.broadcast %cst_46 : f32 to vector<16x64xf32>
    %129 = arith.addf %128, %127 : vector<16x64xf32>
    %130 = arith.mulf %119, %129 : vector<16x64xf32>
    %131 = arith.truncf %130 : vector<16x64xf32> to vector<16x64xbf16>
    %c0_47 = arith.constant 0 : index
    %c0_48 = arith.constant 0 : index
    %c0_49 = arith.constant 0 : index
    %132 = vector.load %arg13[%c0_47, %c0_48, %c0_49] : memref<1x64x32xbf16, #tpu.memory_space<vmem>>, vector<1x64x32xbf16>
    %133 = vector.shape_cast %132 : vector<1x64x32xbf16> to vector<64x32xbf16>
    %cst_50 = arith.constant dense<0.000000e+00> : vector<16x32xf32>
    %134 = tpu.matmul %131, %133, %cst_50 {dimension_numbers = #tpu.dot_dimension_numbers<[1], [0], [0], [1], [0, 0, 1, 1], [], []>} : vector<16x64xbf16>, vector<64x32xbf16>, vector<16x32xf32> -> vector<16x32xf32>
    %c0_51 = arith.constant 0 : index
    %c0_52 = arith.constant 0 : index
    %c0_53 = arith.constant 0 : index
    %135 = vector.load %arg14[%c0_51, %c0_52, %c0_53] : memref<1x1x32xf32, #tpu.memory_space<vmem>>, vector<1x1x32xf32>
    %136 = vector.shape_cast %135 : vector<1x1x32xf32> to vector<1x32xf32>
    %137 = vector.broadcast %136 : vector<1x32xf32> to vector<16x32xf32>
    %138 = arith.addf %134, %137 : vector<16x32xf32>
    %139 = arith.addf %138, %109 : vector<16x32xf32>
    %c0_54 = arith.constant 0 : index
    %c0_55 = arith.constant 0 : index
    %c0_56 = arith.constant 0 : index
    %140 = vector.load %arg15[%c0_54, %c0_55, %c0_56] : memref<1x1x32xf32, #tpu.memory_space<vmem>>, vector<1x1x32xf32>
    %141 = vector.shape_cast %140 : vector<1x1x32xf32> to vector<1x32xf32>
    %c0_57 = arith.constant 0 : index
    %c0_58 = arith.constant 0 : index
    %c0_59 = arith.constant 0 : index
    %142 = vector.load %arg16[%c0_57, %c0_58, %c0_59] : memref<1x1x32xf32, #tpu.memory_space<vmem>>, vector<1x1x32xf32>
    %143 = vector.shape_cast %142 : vector<1x1x32xf32> to vector<1x32xf32>
    %cst_60 = arith.constant dense<0.000000e+00> : vector<16xf32>
    %144 = vector.multi_reduction <add>, %139, %cst_60 [1] : vector<16x32xf32> to vector<16xf32>
    %145 = vector.shape_cast %144 : vector<16xf32> to vector<16x1xf32>
    %cst_61 = arith.constant 3.200000e+01 : f32
    %146 = vector.broadcast %cst_61 : f32 to vector<16x1xf32>
    %147 = arith.divf %145, %146 : vector<16x1xf32>
    %148 = vector.broadcast %147 : vector<16x1xf32> to vector<16x32xf32>
    %149 = arith.subf %139, %148 : vector<16x32xf32>
    %150 = arith.mulf %149, %149 : vector<16x32xf32>
    %cst_62 = arith.constant dense<0.000000e+00> : vector<16xf32>
    %151 = vector.multi_reduction <add>, %150, %cst_62 [1] : vector<16x32xf32> to vector<16xf32>
    %152 = vector.shape_cast %151 : vector<16xf32> to vector<16x1xf32>
    %cst_63 = arith.constant 3.200000e+01 : f32
    %153 = vector.broadcast %cst_63 : f32 to vector<16x1xf32>
    %154 = arith.divf %152, %153 : vector<16x1xf32>
    %cst_64 = arith.constant 9.99999974E-6 : f32
    %155 = vector.broadcast %cst_64 : f32 to vector<16x1xf32>
    %156 = arith.addf %154, %155 : vector<16x1xf32>
    %157 = math.rsqrt %156 : vector<16x1xf32>
    %158 = vector.broadcast %157 : vector<16x1xf32> to vector<16x32xf32>
    %159 = arith.mulf %149, %158 : vector<16x32xf32>
    %160 = vector.broadcast %141 : vector<1x32xf32> to vector<16x32xf32>
    %161 = arith.mulf %159, %160 : vector<16x32xf32>
    %162 = vector.broadcast %143 : vector<1x32xf32> to vector<16x32xf32>
    %163 = arith.addf %161, %162 : vector<16x32xf32>
    %c0_65 = arith.constant 0 : index
    %c0_66 = arith.constant 0 : index
    %164 = vector.load %arg22[%c0_65, %c0_66] : memref<16x32xf32, #tpu.memory_space<vmem>>, vector<16x32xf32>
    tpu.vector_store %arg22[%c0_65, %c0_66], %163 {strides = array<i32>} : memref<16x32xf32, #tpu.memory_space<vmem>>, vector<16x32xf32>,
    %c1_i32 = arith.constant 1 : i32
    %165 = arith.cmpi eq, %arg0, %c1_i32 : i32
    %166 = arith.extui %165 : i1 to i32
    %c0_i32_67 = arith.constant 0 : i32
    %167 = arith.cmpi ne, %166, %c0_i32_67 : i32
    scf.if %167 {
      %168 = vector.shape_cast %163 : vector<16x32xf32> to vector<2x8x32xf32>
      %169 = vector.extract_strided_slice %168 {offsets = [0, 0, 0], sizes = [2, 1, 32], strides = [1, 1, 1]} : vector<2x8x32xf32> to vector<2x1x32xf32>
      %170 = vector.shape_cast %169 : vector<2x1x32xf32> to vector<2x32xf32>
      %171 = arith.truncf %170 : vector<2x32xf32> to vector<2x32xbf16>
      %c0_68 = arith.constant 0 : index
      %c0_69 = arith.constant 0 : index
      %172 = vector.load %arg17[%c0_68, %c0_69] : memref<32x32xbf16, #tpu.memory_space<vmem>>, vector<32x32xbf16>
      %cst_70 = arith.constant dense<0.000000e+00> : vector<2x32xf32>
      %173 = tpu.matmul %171, %172, %cst_70 {dimension_numbers = #tpu.dot_dimension_numbers<[1], [0], [0], [1], [0, 0, 1, 1], [], []>} : vector<2x32xbf16>, vector<32x32xbf16>, vector<2x32xf32> -> vector<2x32xf32>
      %c0_71 = arith.constant 0 : index
      %c0_72 = arith.constant 0 : index
      %174 = vector.load %arg18[%c0_71, %c0_72] : memref<1x32xf32, #tpu.memory_space<vmem>>, vector<1x32xf32>
      %175 = vector.broadcast %174 : vector<1x32xf32> to vector<2x32xf32>
      %176 = arith.addf %173, %175 : vector<2x32xf32>
      %177 = math.tanh %176 : vector<2x32xf32>
      %178 = arith.truncf %177 : vector<2x32xf32> to vector<2x32xbf16>
      %c0_73 = arith.constant 0 : index
      %c0_74 = arith.constant 0 : index
      %179 = vector.load %arg19[%c0_73, %c0_74] : memref<32x2xbf16, #tpu.memory_space<vmem>>, vector<32x2xbf16>
      %cst_75 = arith.constant dense<0.000000e+00> : vector<2x2xf32>
      %180 = tpu.matmul %178, %179, %cst_75 {dimension_numbers = #tpu.dot_dimension_numbers<[1], [0], [0], [1], [0, 0, 1, 1], [], []>} : vector<2x32xbf16>, vector<32x2xbf16>, vector<2x2xf32> -> vector<2x2xf32>
      %c0_76 = arith.constant 0 : index
      %c0_77 = arith.constant 0 : index
      %181 = vector.load %arg20[%c0_76, %c0_77] : memref<1x2xf32, #tpu.memory_space<vmem>>, vector<1x2xf32>
      %182 = vector.broadcast %181 : vector<1x2xf32> to vector<2x2xf32>
      %183 = arith.addf %180, %182 : vector<2x2xf32>
      %c0_78 = arith.constant 0 : index
      %c0_79 = arith.constant 0 : index
      %184 = vector.load %arg21[%c0_78, %c0_79] : memref<2x2xf32, #tpu.memory_space<vmem>>, vector<2x2xf32>
      tpu.vector_store %arg21[%c0_78, %c0_79], %183 {strides = array<i32>} : memref<2x2xf32, #tpu.memory_space<vmem>>, vector<2x2xf32>,
    } else {
    }
    return
  }
  func.func @transform_0(%arg0: i32) -> (i32, i32) {
    %c0_i32 = arith.constant 0 : i32
    %c0_i32_0 = arith.constant 0 : i32
    %c0_i32_1 = arith.constant 0 : i32
    return %c0_i32, %c0_i32_0 : i32, i32
  }
  func.func @transform_1(%arg0: i32) -> (i32, i32, i32) {
    %c0_i32 = arith.constant 0 : i32
    %c0_i32_0 = arith.constant 0 : i32
    %c0_i32_1 = arith.constant 0 : i32
    %c0_i32_2 = arith.constant 0 : i32
    return %c0_i32, %c0_i32_0, %c0_i32_1 : i32, i32, i32
  }
  func.func @transform_2(%arg0: i32) -> (i32, i32) {
    %c0_i32 = arith.constant 0 : i32
    %c0_i32_0 = arith.constant 0 : i32
    %c0_i32_1 = arith.constant 0 : i32
    return %c0_i32, %c0_i32_0 : i32, i32
  }
  func.func @transform_3(%arg0: i32) -> (i32, i32) {
    %c0_i32 = arith.constant 0 : i32
    %c0_i32_0 = arith.constant 0 : i32
    %c0_i32_1 = arith.constant 0 : i32
    return %c0_i32, %c0_i32_0 : i32, i32
  }
  func.func @transform_4(%arg0: i32) -> (i32, i32, i32) {
    %c0_i32 = arith.constant 0 : i32
    %c0_i32_0 = arith.constant 0 : i32
    %c0_i32_1 = arith.constant 0 : i32
    return %arg0, %c0_i32, %c0_i32_0 : i32, i32, i32
  }
  func.func @transform_5(%arg0: i32) -> (i32, i32, i32) {
    %c0_i32 = arith.constant 0 : i32
    %c0_i32_0 = arith.constant 0 : i32
    %c0_i32_1 = arith.constant 0 : i32
    return %arg0, %c0_i32, %c0_i32_0 : i32, i32, i32
  }
  func.func @transform_6(%arg0: i32) -> (i32, i32, i32, i32) {
    %c0_i32 = arith.constant 0 : i32
    %c0_i32_0 = arith.constant 0 : i32
    %c0_i32_1 = arith.constant 0 : i32
    %c0_i32_2 = arith.constant 0 : i32
    return %arg0, %c0_i32, %c0_i32_0, %c0_i32_1 : i32, i32, i32, i32
  }
  func.func @transform_7(%arg0: i32) -> (i32, i32, i32) {
    %c0_i32 = arith.constant 0 : i32
    %c0_i32_0 = arith.constant 0 : i32
    %c0_i32_1 = arith.constant 0 : i32
    return %arg0, %c0_i32, %c0_i32_0 : i32, i32, i32
  }
  func.func @transform_8(%arg0: i32) -> (i32, i32, i32) {
    %c0_i32 = arith.constant 0 : i32
    %c0_i32_0 = arith.constant 0 : i32
    %c0_i32_1 = arith.constant 0 : i32
    return %arg0, %c0_i32, %c0_i32_0 : i32, i32, i32
  }
  func.func @transform_9(%arg0: i32) -> (i32, i32, i32) {
    %c0_i32 = arith.constant 0 : i32
    %c0_i32_0 = arith.constant 0 : i32
    %c0_i32_1 = arith.constant 0 : i32
    return %arg0, %c0_i32, %c0_i32_0 : i32, i32, i32
  }
  func.func @transform_10(%arg0: i32) -> (i32, i32, i32) {
    %c0_i32 = arith.constant 0 : i32
    %c0_i32_0 = arith.constant 0 : i32
    %c0_i32_1 = arith.constant 0 : i32
    return %arg0, %c0_i32, %c0_i32_0 : i32, i32, i32
  }
  func.func @transform_11(%arg0: i32) -> (i32, i32, i32) {
    %c0_i32 = arith.constant 0 : i32
    %c0_i32_0 = arith.constant 0 : i32
    %c0_i32_1 = arith.constant 0 : i32
    return %arg0, %c0_i32, %c0_i32_0 : i32, i32, i32
  }
  func.func @transform_12(%arg0: i32) -> (i32, i32, i32) {
    %c0_i32 = arith.constant 0 : i32
    %c0_i32_0 = arith.constant 0 : i32
    %c0_i32_1 = arith.constant 0 : i32
    return %arg0, %c0_i32, %c0_i32_0 : i32, i32, i32
  }
  func.func @transform_13(%arg0: i32) -> (i32, i32, i32) {
    %c0_i32 = arith.constant 0 : i32
    %c0_i32_0 = arith.constant 0 : i32
    %c0_i32_1 = arith.constant 0 : i32
    return %arg0, %c0_i32, %c0_i32_0 : i32, i32, i32
  }
  func.func @transform_14(%arg0: i32) -> (i32, i32, i32) {
    %c0_i32 = arith.constant 0 : i32
    %c0_i32_0 = arith.constant 0 : i32
    %c0_i32_1 = arith.constant 0 : i32
    return %arg0, %c0_i32, %c0_i32_0 : i32, i32, i32
  }
  func.func @transform_15(%arg0: i32) -> (i32, i32, i32) {
    %c0_i32 = arith.constant 0 : i32
    %c0_i32_0 = arith.constant 0 : i32
    %c0_i32_1 = arith.constant 0 : i32
    return %arg0, %c0_i32, %c0_i32_0 : i32, i32, i32
  }
  func.func @transform_16(%arg0: i32) -> (i32, i32) {
    %c0_i32 = arith.constant 0 : i32
    %c0_i32_0 = arith.constant 0 : i32
    %c0_i32_1 = arith.constant 0 : i32
    return %c0_i32, %c0_i32_0 : i32, i32
  }
  func.func @transform_17(%arg0: i32) -> (i32, i32) {
    %c0_i32 = arith.constant 0 : i32
    %c0_i32_0 = arith.constant 0 : i32
    %c0_i32_1 = arith.constant 0 : i32
    return %c0_i32, %c0_i32_0 : i32, i32
  }
  func.func @transform_18(%arg0: i32) -> (i32, i32) {
    %c0_i32 = arith.constant 0 : i32
    %c0_i32_0 = arith.constant 0 : i32
    %c0_i32_1 = arith.constant 0 : i32
    return %c0_i32, %c0_i32_0 : i32, i32
  }
  func.func @transform_19(%arg0: i32) -> (i32, i32) {
    %c0_i32 = arith.constant 0 : i32
    %c0_i32_0 = arith.constant 0 : i32
    %c0_i32_1 = arith.constant 0 : i32
    return %c0_i32, %c0_i32_0 : i32, i32
  }
  func.func @transform_20(%arg0: i32) -> (i32, i32) {
    %c0_i32 = arith.constant 0 : i32
    %c0_i32_0 = arith.constant 0 : i32
    %c0_i32_1 = arith.constant 0 : i32
    return %c0_i32, %c0_i32_0 : i32, i32
  }
}

</mosaic_0001>

<llo_original>
// kernel: tpu_custom_call.1
$region0: #{tpu_custom_call.1}
  #allocation0 [shape = 'u32[]', space=smem, size = 0x4, offset = 0x4, fixed_abs, tag = 'smem constant byte address 0x4 - core index']
  #allocation1 [shape = 'u32[72,128]{1,0:T(1,128)}', space=vmem, size = 0x9000, scoped, tag = 'internal scratch']
  #allocation2 [shape = 'f32[16,32]{1,0:T(8,128)}', space=vmem, size = 0x2000, scoped, tag = 'scratch operand']
  %s0 = inlined_call_operand.vmem [shape: f32[16,32], index: 0, kind: input, shape index: {}]
  %s1 = inlined_call_operand.hbm [shape: f32[8,1,8], index: 1, kind: input, shape index: {}]
  %s2 = inlined_call_operand.vmem [shape: f32[1,32], index: 2, kind: input, shape index: {}]
  %s3 = inlined_call_operand.hbm [shape: f32[1,32], index: 3, kind: input, shape index: {}]
  %s4 = inlined_call_operand.vmem [shape: bf16[2,32,96], index: 4, kind: input, shape index: {}]
  %s5 = inlined_call_operand.vmem [shape: f32[2,1,96], index: 5, kind: input, shape index: {}]
  %s6 = inlined_call_operand.vmem [shape: bf16[2,4,8,32], index: 6, kind: input, shape index: {}]
  %s7 = inlined_call_operand.vmem [shape: f32[2,1,32], index: 7, kind: input, shape index: {}]
  %s8 = inlined_call_operand.vmem [shape: f32[2,1,32], index: 8, kind: input, shape index: {}]
  %s9 = inlined_call_operand.hbm [shape: f32[2,1,32], index: 9, kind: input, shape index: {}]
  %s10 = inlined_call_operand.vmem [shape: bf16[2,32,64], index: 10, kind: input, shape index: {}]
  %s11 = inlined_call_operand.vmem [shape: f32[2,1,64], index: 11, kind: input, shape index: {}]
  %s12 = inlined_call_operand.vmem [shape: bf16[2,64,32], index: 12, kind: input, shape index: {}]
  %s13 = inlined_call_operand.vmem [shape: f32[2,1,32], index: 13, kind: input, shape index: {}]
  %s14 = inlined_call_operand.vmem [shape: f32[2,1,32], index: 14, kind: input, shape index: {}]
  %s15 = inlined_call_operand.hbm [shape: f32[2,1,32], index: 15, kind: input, shape index: {}]
  %s16 = inlined_call_operand.hbm [shape: bf16[32,32], index: 16, kind: input, shape index: {}]
  %s17 = inlined_call_operand.vmem [shape: f32[1,32], index: 17, kind: input, shape index: {}]
  %s18 = inlined_call_operand.vmem [shape: bf16[32,2], index: 18, kind: input, shape index: {}]
  %s19 = inlined_call_operand.vmem [shape: f32[1,2], index: 19, kind: input, shape index: {}]
  %s20 = inlined_call_operand.hbm [shape: f32[2,2], index: 20, kind: output, shape index: {}]
  %s21 = sld [smem:[#allocation0]]
  $region141: #{tpu_custom_call.1} parent=0
    _
  %s23 = ssub.s32 1, %s21
  %s24 = scalar_select 0, %s23, %s21
  $region1: #{tpu_custom_call.1} parent=0
    #allocation3 [shape = 'u8[4096]{0}', space=vmem, size = 0x1000, scoped, tag = 'input window, operand 1, single buffered']
    #allocation4 [shape = 's32[2]{0}', space=sflag, size = 0x8, scoped, tag = 'scoped memory for tpu_custom_call.1']
    #allocation5 [shape = 's32[2]{0}', space=sflag, size = 0x8, scoped, tag = 'scoped memory for tpu_custom_call.1']
    #allocation6 [shape = 'u8[512]{0}', space=vmem, size = 0x400, scoped, tag = 'input window, operand 3, single buffered']
    #allocation7 [shape = 's32[1]{0}', space=sflag, size = 0x4, scoped, tag = 'scoped memory for tpu_custom_call.1']
    #allocation8 [shape = 'u8[1024]{0}', space=vmem, size = 0x400, scoped, tag = 'input window, operand 9']
    #allocation9 [shape = 'u8[1024]{0}', space=vmem, size = 0x400, scoped, tag = 'input window, operand 15']
    #allocation10 [shape = 'u8[8192]{0}', space=vmem, size = 0x2000, scoped, tag = 'input window, operand 16, single buffered']
    #allocation11 [shape = 'u8[1024]{0}', space=vmem, size = 0x400, scoped, tag = 'output window, operand 0, single buffered']
    %25 = vsyncpa [#allocation4], 0
    %26 = vsyncpa [#allocation7], 0
    %27 = vsyncpa [#allocation5], 0
    loop: start=0, step=1, limit=4
    $region2: #{tpu_custom_call.1} parent=1 // loop_pre_header
      _
    $region3: #{tpu_custom_call.1} parent=1 // loop_header
      %s29 = sphi 0, %s33
      %p30 = scmp.ge.s32.totalorder %s29, 4
      %s37 = sphi 0, %s37
      %s39 = sphi 0, %s37
      %s40 = sphi 0, %s39
      %s54 = sphi 0, %s40
      %s58 = sphi 0, %s58
      %s60 = sphi 0, %s58
      %s61 = sphi 0, %s60
      %s75 = sphi 0, %s61
      %s79 = sphi 0, %s79
      %s81 = sphi 0, %s79
      %s82 = sphi 0, %s81
      %s96 = sphi 0, %s82
      %s100 = sphi 0, %s100
      %s102 = sphi 0, %s100
      %s103 = sphi 0, %s102
      %s117 = sphi 0, %s103
      %s123 = sphi 0, %s125
      %s126 = sphi 0, %s123
      %s127 = sphi 0, %s126
      %s143 = sphi 0, %s127
      %s149 = sphi 0, %s151
      %s152 = sphi 0, %s149
      %s153 = sphi 0, %s152
      %s169 = sphi 0, %s153
      %s175 = sphi 0, %s177
      %s178 = sphi 0, %s175
      %s179 = sphi 0, %s178
      %s195 = sphi 0, %s179
      %s201 = sphi 0, %s203
      %s204 = sphi 0, %s201
      %s205 = sphi 0, %s204
      %s221 = sphi 0, %s205
      %s227 = sphi 0, %s229
      %s230 = sphi 0, %s227
      %s231 = sphi 0, %s230
      %s247 = sphi 0, %s231
      %s253 = sphi 0, %s255
      %s256 = sphi 0, %s253
      %s257 = sphi 0, %s256
      %s273 = sphi 0, %s257
      %s279 = sphi 0, %s281
      %s282 = sphi 0, %s279
      %s283 = sphi 0, %s282
      %s299 = sphi 0, %s283
      %s305 = sphi 0, %s307
      %s308 = sphi 0, %s305
      %s309 = sphi 0, %s308
      %s325 = sphi 0, %s309
      %s331 = sphi 0, %s333
      %s334 = sphi 0, %s331
      %s335 = sphi 0, %s334
      %s351 = sphi 0, %s335
      %s357 = sphi 0, %s359
      %s360 = sphi 0, %s357
      %s361 = sphi 0, %s360
      %s377 = sphi 0, %s361
      %s383 = sphi 0, %s385
      %s386 = sphi 0, %s383
      %s387 = sphi 0, %s386
      %s403 = sphi 0, %s387
      %s409 = sphi 0, %s411
      %s412 = sphi 0, %s409
      %s413 = sphi 0, %s412
      %s429 = sphi 0, %s413
      %s433 = sphi 0, %s433
      %s435 = sphi 0, %s433
      %s436 = sphi 0, %s435
      %s450 = sphi 0, %s436
      %s454 = sphi 0, %s454
      %s456 = sphi 0, %s454
      %s457 = sphi 0, %s456
      %s471 = sphi 0, %s457
      %s475 = sphi 0, %s475
      %s477 = sphi 0, %s475
      %s478 = sphi 0, %s477
      %s492 = sphi 0, %s478
      %s496 = sphi 0, %s496
      %s498 = sphi 0, %s496
      %s499 = sphi 0, %s498
      %s513 = sphi 0, %s499
      %s517 = sphi 0, %s517
      %s519 = sphi 0, %s517
      %s520 = sphi 0, %s519
      %s534 = sphi 0, %s520
    $region4: #{tpu_custom_call.1} parent=1 // loop_header_branch
      %32 = sbr.rel (%p30) target = $region8
    $region5: #{tpu_custom_call.1} parent=1 // loop_body
      %s34 = ssub.s32 %s29, 1
      %s35 = ssub.s32 %s29, 2
      %s36 = sadd.s32 %s29, 1
      %s38 = sadd.s32 %s37, 1
      %p41 = scmp.eq.s32.totalorder %s29, 1
      %p42 = scmp.ne.s32.totalorder %s37, %s39
      %p43 = scmp.eq.s32.totalorder %s29, 0
      %p44 = por %p42, %p43
      %p45 = scmp.ne.s32.totalorder %s37, %s39
      %p46 = scmp.eq.s32.totalorder %s34, 1
      %p47 = por %p45, %p46
      %p48 = scmp.ne.s32.totalorder %s39, %s40
      %p49 = scmp.eq.s32.totalorder %s34, 0
      %p50 = por %p48, %p49
      %p51 = scmp.ne.s32.totalorder %s39, %s40
      %p52 = scmp.eq.s32.totalorder %s35, 1
      %p53 = por %p51, %p52
      %p55 = scmp.ne.s32.totalorder %s40, %s54
      %p56 = scmp.eq.s32.totalorder %s35, 0
      %p57 = por %p55, %p56
      %s59 = sadd.s32 %s58, 1
      %p62 = scmp.eq.s32.totalorder %s29, 1
      %p63 = scmp.ne.s32.totalorder %s58, %s60
      %p64 = scmp.eq.s32.totalorder %s29, 0
      %p65 = por %p63, %p64
      %p66 = scmp.ne.s32.totalorder %s58, %s60
      %p67 = scmp.eq.s32.totalorder %s34, 1
      %p68 = por %p66, %p67
      %p69 = scmp.ne.s32.totalorder %s60, %s61
      %p70 = scmp.eq.s32.totalorder %s34, 0
      %p71 = por %p69, %p70
      %p72 = scmp.ne.s32.totalorder %s60, %s61
      %p73 = scmp.eq.s32.totalorder %s35, 1
      %p74 = por %p72, %p73
      %p76 = scmp.ne.s32.totalorder %s61, %s75
      %p77 = scmp.eq.s32.totalorder %s35, 0
      %p78 = por %p76, %p77
      %s80 = sadd.s32 %s79, 1
      %p83 = scmp.eq.s32.totalorder %s29, 1
      %p84 = scmp.ne.s32.totalorder %s79, %s81
      %p85 = scmp.eq.s32.totalorder %s29, 0
      %p86 = por %p84, %p85
      %p87 = scmp.ne.s32.totalorder %s79, %s81
      %p88 = scmp.eq.s32.totalorder %s34, 1
      %p89 = por %p87, %p88
      %p90 = scmp.ne.s32.totalorder %s81, %s82
      %p91 = scmp.eq.s32.totalorder %s34, 0
      %p92 = por %p90, %p91
      %p93 = scmp.ne.s32.totalorder %s81, %s82
      %p94 = scmp.eq.s32.totalorder %s35, 1
      %p95 = por %p93, %p94
      %p97 = scmp.ne.s32.totalorder %s82, %s96
      %p98 = scmp.eq.s32.totalorder %s35, 0
      %p99 = por %p97, %p98
      %s101 = sadd.s32 %s100, 1
      %p104 = scmp.eq.s32.totalorder %s29, 1
      %p105 = scmp.ne.s32.totalorder %s100, %s102
      %p106 = scmp.eq.s32.totalorder %s29, 0
      %p107 = por %p105, %p106
      %p108 = scmp.ne.s32.totalorder %s100, %s102
      %p109 = scmp.eq.s32.totalorder %s34, 1
      %p110 = por %p108, %p109
      %p111 = scmp.ne.s32.totalorder %s102, %s103
      %p112 = scmp.eq.s32.totalorder %s34, 0
      %p113 = por %p111, %p112
      %p114 = scmp.ne.s32.totalorder %s102, %s103
      %p115 = scmp.eq.s32.totalorder %s35, 1
      %p116 = por %p114, %p115
      %p118 = scmp.ne.s32.totalorder %s103, %s117
      %p119 = scmp.eq.s32.totalorder %s35, 0
      %p120 = por %p118, %p119
      %s121 = ssub.s32 %s29, %s36
      %p122 = scmp.eq.s32.totalorder %s121, 0
      %s124 = sadd.s32 %s123, 1
      %s125 = scalar_select %p122, %s123, %s124
      %p128 = pneg %p122
      %p129 = scmp.eq.s32.totalorder %s29, 1
      %p130 = por %p128, %p129
      %p131 = scmp.ne.s32.totalorder %s123, %s126
      %p132 = scmp.eq.s32.totalorder %s29, 0
      %p133 = por %p131, %p132
      %p134 = scmp.ne.s32.totalorder %s123, %s126
      %p135 = scmp.eq.s32.totalorder %s34, 1
      %p136 = por %p134, %p135
      %p137 = scmp.ne.s32.totalorder %s126, %s127
      %p138 = scmp.eq.s32.totalorder %s34, 0
      %p139 = por %p137, %p138
      %p140 = scmp.ne.s32.totalorder %s126, %s127
      %p141 = scmp.eq.s32.totalorder %s35, 1
      %p142 = por %p140, %p141
      %p144 = scmp.ne.s32.totalorder %s127, %s143
      %p145 = scmp.eq.s32.totalorder %s35, 0
      %p146 = por %p144, %p145
      %s147 = ssub.s32 %s29, %s36
      %p148 = scmp.eq.s32.totalorder %s147, 0
      %s150 = sadd.s32 %s149, 1
      %s151 = scalar_select %p148, %s149, %s150
      %p154 = pneg %p148
      %p155 = scmp.eq.s32.totalorder %s29, 1
      %p156 = por %p154, %p155
      %p157 = scmp.ne.s32.totalorder %s149, %s152
      %p158 = scmp.eq.s32.totalorder %s29, 0
      %p159 = por %p157, %p158
      %p160 = scmp.ne.s32.totalorder %s149, %s152
      %p161 = scmp.eq.s32.totalorder %s34, 1
      %p162 = por %p160, %p161
      %p163 = scmp.ne.s32.totalorder %s152, %s153
      %p164 = scmp.eq.s32.totalorder %s34, 0
      %p165 = por %p163, %p164
      %p166 = scmp.ne.s32.totalorder %s152, %s153
      %p167 = scmp.eq.s32.totalorder %s35, 1
      %p168 = por %p166, %p167
      %p170 = scmp.ne.s32.totalorder %s153, %s169
      %p171 = scmp.eq.s32.totalorder %s35, 0
      %p172 = por %p170, %p171
      %s173 = ssub.s32 %s29, %s36
      %p174 = scmp.eq.s32.totalorder %s173, 0
      %s176 = sadd.s32 %s175, 1
      %s177 = scalar_select %p174, %s175, %s176
      %p180 = pneg %p174
      %p181 = scmp.eq.s32.totalorder %s29, 1
      %p182 = por %p180, %p181
      %p183 = scmp.ne.s32.totalorder %s175, %s178
      %p184 = scmp.eq.s32.totalorder %s29, 0
      %p185 = por %p183, %p184
      %p186 = scmp.ne.s32.totalorder %s175, %s178
      %p187 = scmp.eq.s32.totalorder %s34, 1
      %p188 = por %p186, %p187
      %p189 = scmp.ne.s32.totalorder %s178, %s179
      %p190 = scmp.eq.s32.totalorder %s34, 0
      %p191 = por %p189, %p190
      %p192 = scmp.ne.s32.totalorder %s178, %s179
      %p193 = scmp.eq.s32.totalorder %s35, 1
      %p194 = por %p192, %p193
      %p196 = scmp.ne.s32.totalorder %s179, %s195
      %p197 = scmp.eq.s32.totalorder %s35, 0
      %p198 = por %p196, %p197
      %s199 = ssub.s32 %s29, %s36
      %p200 = scmp.eq.s32.totalorder %s199, 0
      %s202 = sadd.s32 %s201, 1
      %s203 = scalar_select %p200, %s201, %s202
      %p206 = pneg %p200
      %p207 = scmp.eq.s32.totalorder %s29, 1
      %p208 = por %p206, %p207
      %p209 = scmp.ne.s32.totalorder %s201, %s204
      %p210 = scmp.eq.s32.totalorder %s29, 0
      %p211 = por %p209, %p210
      %p212 = scmp.ne.s32.totalorder %s201, %s204
      %p213 = scmp.eq.s32.totalorder %s34, 1
      %p214 = por %p212, %p213
      %p215 = scmp.ne.s32.totalorder %s204, %s205
      %p216 = scmp.eq.s32.totalorder %s34, 0
      %p217 = por %p215, %p216
      %p218 = scmp.ne.s32.totalorder %s204, %s205
      %p219 = scmp.eq.s32.totalorder %s35, 1
      %p220 = por %p218, %p219
      %p222 = scmp.ne.s32.totalorder %s205, %s221
      %p223 = scmp.eq.s32.totalorder %s35, 0
      %p224 = por %p222, %p223
      %s225 = ssub.s32 %s29, %s36
      %p226 = scmp.eq.s32.totalorder %s225, 0
      %s228 = sadd.s32 %s227, 1
      %s229 = scalar_select %p226, %s227, %s228
      %p232 = pneg %p226
      %p233 = scmp.eq.s32.totalorder %s29, 1
      %p234 = por %p232, %p233
      %p235 = scmp.ne.s32.totalorder %s227, %s230
      %p236 = scmp.eq.s32.totalorder %s29, 0
      %p237 = por %p235, %p236
      %p238 = scmp.ne.s32.totalorder %s227, %s230
      %p239 = scmp.eq.s32.totalorder %s34, 1
      %p240 = por %p238, %p239
      %p241 = scmp.ne.s32.totalorder %s230, %s231
      %p242 = scmp.eq.s32.totalorder %s34, 0
      %p243 = por %p241, %p242
      %p244 = scmp.ne.s32.totalorder %s230, %s231
      %p245 = scmp.eq.s32.totalorder %s35, 1
      %p246 = por %p244, %p245
      %p248 = scmp.ne.s32.totalorder %s231, %s247
      %p249 = scmp.eq.s32.totalorder %s35, 0
      %p250 = por %p248, %p249
      %s251 = ssub.s32 %s29, %s36
      %p252 = scmp.eq.s32.totalorder %s251, 0
      %s254 = sadd.s32 %s253, 1
      %s255 = scalar_select %p252, %s253, %s254
      %p258 = pneg %p252
      %p259 = scmp.eq.s32.totalorder %s29, 1
      %p260 = por %p258, %p259
      %p261 = scmp.ne.s32.totalorder %s253, %s256
      %p262 = scmp.eq.s32.totalorder %s29, 0
      %p263 = por %p261, %p262
      %p264 = scmp.ne.s32.totalorder %s253, %s256
      %p265 = scmp.eq.s32.totalorder %s34, 1
      %p266 = por %p264, %p265
      %p267 = scmp.ne.s32.totalorder %s256, %s257
      %p268 = scmp.eq.s32.totalorder %s34, 0
      %p269 = por %p267, %p268
      %p270 = scmp.ne.s32.totalorder %s256, %s257
      %p271 = scmp.eq.s32.totalorder %s35, 1
      %p272 = por %p270, %p271
      %p274 = scmp.ne.s32.totalorder %s257, %s273
      %p275 = scmp.eq.s32.totalorder %s35, 0
      %p276 = por %p274, %p275
      %s277 = ssub.s32 %s29, %s36
      %p278 = scmp.eq.s32.totalorder %s277, 0
      %s280 = sadd.s32 %s279, 1
      %s281 = scalar_select %p278, %s279, %s280
      %p284 = pneg %p278
      %p285 = scmp.eq.s32.totalorder %s29, 1
      %p286 = por %p284, %p285
      %p287 = scmp.ne.s32.totalorder %s279, %s282
      %p288 = scmp.eq.s32.totalorder %s29, 0
      %p289 = por %p287, %p288
      %p290 = scmp.ne.s32.totalorder %s279, %s282
      %p291 = scmp.eq.s32.totalorder %s34, 1
      %p292 = por %p290, %p291
      %p293 = scmp.ne.s32.totalorder %s282, %s283
      %p294 = scmp.eq.s32.totalorder %s34, 0
      %p295 = por %p293, %p294
      %p296 = scmp.ne.s32.totalorder %s282, %s283
      %p297 = scmp.eq.s32.totalorder %s35, 1
      %p298 = por %p296, %p297
      %p300 = scmp.ne.s32.totalorder %s283, %s299
      %p301 = scmp.eq.s32.totalorder %s35, 0
      %p302 = por %p300, %p301
      %s303 = ssub.s32 %s29, %s36
      %p304 = scmp.eq.s32.totalorder %s303, 0
      %s306 = sadd.s32 %s305, 1
      %s307 = scalar_select %p304, %s305, %s306
      %p310 = pneg %p304
      %p311 = scmp.eq.s32.totalorder %s29, 1
      %p312 = por %p310, %p311
      %p313 = scmp.ne.s32.totalorder %s305, %s308
      %p314 = scmp.eq.s32.totalorder %s29, 0
      %p315 = por %p313, %p314
      %p316 = scmp.ne.s32.totalorder %s305, %s308
      %p317 = scmp.eq.s32.totalorder %s34, 1
      %p318 = por %p316, %p317
      %p319 = scmp.ne.s32.totalorder %s308, %s309
      %p320 = scmp.eq.s32.totalorder %s34, 0
      %p321 = por %p319, %p320
      %p322 = scmp.ne.s32.totalorder %s308, %s309
      %p323 = scmp.eq.s32.totalorder %s35, 1
      %p324 = por %p322, %p323
      %p326 = scmp.ne.s32.totalorder %s309, %s325
      %p327 = scmp.eq.s32.totalorder %s35, 0
      %p328 = por %p326, %p327
      %s329 = ssub.s32 %s29, %s36
      %p330 = scmp.eq.s32.totalorder %s329, 0
      %s332 = sadd.s32 %s331, 1
      %s333 = scalar_select %p330, %s331, %s332
      %p336 = pneg %p330
      %p337 = scmp.eq.s32.totalorder %s29, 1
      %p338 = por %p336, %p337
      %p339 = scmp.ne.s32.totalorder %s331, %s334
      %p340 = scmp.eq.s32.totalorder %s29, 0
      %p341 = por %p339, %p340
      %p342 = scmp.ne.s32.totalorder %s331, %s334
      %p343 = scmp.eq.s32.totalorder %s34, 1
      %p344 = por %p342, %p343
      %p345 = scmp.ne.s32.totalorder %s334, %s335
      %p346 = scmp.eq.s32.totalorder %s34, 0
      %p347 = por %p345, %p346
      %p348 = scmp.ne.s32.totalorder %s334, %s335
      %p349 = scmp.eq.s32.totalorder %s35, 1
      %p350 = por %p348, %p349
      %p352 = scmp.ne.s32.totalorder %s335, %s351
      %p353 = scmp.eq.s32.totalorder %s35, 0
      %p354 = por %p352, %p353
      %s355 = ssub.s32 %s29, %s36
      %p356 = scmp.eq.s32.totalorder %s355, 0
      %s358 = sadd.s32 %s357, 1
      %s359 = scalar_select %p356, %s357, %s358
      %p362 = pneg %p356
      %p363 = scmp.eq.s32.totalorder %s29, 1
      %p364 = por %p362, %p363
      %p365 = scmp.ne.s32.totalorder %s357, %s360
      %p366 = scmp.eq.s32.totalorder %s29, 0
      %p367 = por %p365, %p366
      %p368 = scmp.ne.s32.totalorder %s357, %s360
      %p369 = scmp.eq.s32.totalorder %s34, 1
      %p370 = por %p368, %p369
      %p371 = scmp.ne.s32.totalorder %s360, %s361
      %p372 = scmp.eq.s32.totalorder %s34, 0
      %p373 = por %p371, %p372
      %p374 = scmp.ne.s32.totalorder %s360, %s361
      %p375 = scmp.eq.s32.totalorder %s35, 1
      %p376 = por %p374, %p375
      %p378 = scmp.ne.s32.totalorder %s361, %s377
      %p379 = scmp.eq.s32.totalorder %s35, 0
      %p380 = por %p378, %p379
      %s381 = ssub.s32 %s29, %s36
      %p382 = scmp.eq.s32.totalorder %s381, 0
      %s384 = sadd.s32 %s383, 1
      %s385 = scalar_select %p382, %s383, %s384
      %p388 = pneg %p382
      %p389 = scmp.eq.s32.totalorder %s29, 1
      %p390 = por %p388, %p389
      %p391 = scmp.ne.s32.totalorder %s383, %s386
      %p392 = scmp.eq.s32.totalorder %s29, 0
      %p393 = por %p391, %p392
      %p394 = scmp.ne.s32.totalorder %s383, %s386
      %p395 = scmp.eq.s32.totalorder %s34, 1
      %p396 = por %p394, %p395
      %p397 = scmp.ne.s32.totalorder %s386, %s387
      %p398 = scmp.eq.s32.totalorder %s34, 0
      %p399 = por %p397, %p398
      %p400 = scmp.ne.s32.totalorder %s386, %s387
      %p401 = scmp.eq.s32.totalorder %s35, 1
      %p402 = por %p400, %p401
      %p404 = scmp.ne.s32.totalorder %s387, %s403
      %p405 = scmp.eq.s32.totalorder %s35, 0
      %p406 = por %p404, %p405
      %s407 = ssub.s32 %s29, %s36
      %p408 = scmp.eq.s32.totalorder %s407, 0
      %s410 = sadd.s32 %s409, 1
      %s411 = scalar_select %p408, %s409, %s410
      %p414 = pneg %p408
      %p415 = scmp.eq.s32.totalorder %s29, 1
      %p416 = por %p414, %p415
      %p417 = scmp.ne.s32.totalorder %s409, %s412
      %p418 = scmp.eq.s32.totalorder %s29, 0
      %p419 = por %p417, %p418
      %p420 = scmp.ne.s32.totalorder %s409, %s412
      %p421 = scmp.eq.s32.totalorder %s34, 1
      %p422 = por %p420, %p421
      %p423 = scmp.ne.s32.totalorder %s412, %s413
      %p424 = scmp.eq.s32.totalorder %s34, 0
      %p425 = por %p423, %p424
      %p426 = scmp.ne.s32.totalorder %s412, %s413
      %p427 = scmp.eq.s32.totalorder %s35, 1
      %p428 = por %p426, %p427
      %p430 = scmp.ne.s32.totalorder %s413, %s429
      %p431 = scmp.eq.s32.totalorder %s35, 0
      %p432 = por %p430, %p431
      %s434 = sadd.s32 %s433, 1
      %p437 = scmp.eq.s32.totalorder %s29, 1
      %p438 = scmp.ne.s32.totalorder %s433, %s435
      %p439 = scmp.eq.s32.totalorder %s29, 0
      %p440 = por %p438, %p439
      %p441 = scmp.ne.s32.totalorder %s433, %s435
      %p442 = scmp.eq.s32.totalorder %s34, 1
      %p443 = por %p441, %p442
      %p444 = scmp.ne.s32.totalorder %s435, %s436
      %p445 = scmp.eq.s32.totalorder %s34, 0
      %p446 = por %p444, %p445
      %p447 = scmp.ne.s32.totalorder %s435, %s436
      %p448 = scmp.eq.s32.totalorder %s35, 1
      %p449 = por %p447, %p448
      %p451 = scmp.ne.s32.totalorder %s436, %s450
      %p452 = scmp.eq.s32.totalorder %s35, 0
      %p453 = por %p451, %p452
      %s455 = sadd.s32 %s454, 1
      %p458 = scmp.eq.s32.totalorder %s29, 1
      %p459 = scmp.ne.s32.totalorder %s454, %s456
      %p460 = scmp.eq.s32.totalorder %s29, 0
      %p461 = por %p459, %p460
      %p462 = scmp.ne.s32.totalorder %s454, %s456
      %p463 = scmp.eq.s32.totalorder %s34, 1
      %p464 = por %p462, %p463
      %p465 = scmp.ne.s32.totalorder %s456, %s457
      %p466 = scmp.eq.s32.totalorder %s34, 0
      %p467 = por %p465, %p466
      %p468 = scmp.ne.s32.totalorder %s456, %s457
      %p469 = scmp.eq.s32.totalorder %s35, 1
      %p470 = por %p468, %p469
      %p472 = scmp.ne.s32.totalorder %s457, %s471
      %p473 = scmp.eq.s32.totalorder %s35, 0
      %p474 = por %p472, %p473
      %s476 = sadd.s32 %s475, 1
      %p479 = scmp.eq.s32.totalorder %s29, 1
      %p480 = scmp.ne.s32.totalorder %s475, %s477
      %p481 = scmp.eq.s32.totalorder %s29, 0
      %p482 = por %p480, %p481
      %p483 = scmp.ne.s32.totalorder %s475, %s477
      %p484 = scmp.eq.s32.totalorder %s34, 1
      %p485 = por %p483, %p484
      %p486 = scmp.ne.s32.totalorder %s477, %s478
      %p487 = scmp.eq.s32.totalorder %s34, 0
      %p488 = por %p486, %p487
      %p489 = scmp.ne.s32.totalorder %s477, %s478
      %p490 = scmp.eq.s32.totalorder %s35, 1
      %p491 = por %p489, %p490
      %p493 = scmp.ne.s32.totalorder %s478, %s492
      %p494 = scmp.eq.s32.totalorder %s35, 0
      %p495 = por %p493, %p494
      %s497 = sadd.s32 %s496, 1
      %p500 = scmp.eq.s32.totalorder %s29, 1
      %p501 = scmp.ne.s32.totalorder %s496, %s498
      %p502 = scmp.eq.s32.totalorder %s29, 0
      %p503 = por %p501, %p502
      %p504 = scmp.ne.s32.totalorder %s496, %s498
      %p505 = scmp.eq.s32.totalorder %s34, 1
      %p506 = por %p504, %p505
      %p507 = scmp.ne.s32.totalorder %s498, %s499
      %p508 = scmp.eq.s32.totalorder %s34, 0
      %p509 = por %p507, %p508
      %p510 = scmp.ne.s32.totalorder %s498, %s499
      %p511 = scmp.eq.s32.totalorder %s35, 1
      %p512 = por %p510, %p511
      %p514 = scmp.ne.s32.totalorder %s499, %s513
      %p515 = scmp.eq.s32.totalorder %s35, 0
      %p516 = por %p514, %p515
      %s518 = sadd.s32 %s517, 1
      %p521 = scmp.eq.s32.totalorder %s29, 1
      %p522 = scmp.ne.s32.totalorder %s517, %s519
      %p523 = scmp.eq.s32.totalorder %s29, 0
      %p524 = por %p522, %p523
      %p525 = scmp.ne.s32.totalorder %s517, %s519
      %p526 = scmp.eq.s32.totalorder %s34, 1
      %p527 = por %p525, %p526
      %p528 = scmp.ne.s32.totalorder %s519, %s520
      %p529 = scmp.eq.s32.totalorder %s34, 0
      %p530 = por %p528, %p529
      %p531 = scmp.ne.s32.totalorder %s519, %s520
      %p532 = scmp.eq.s32.totalorder %s35, 1
      %p533 = por %p531, %p532
      %p535 = scmp.ne.s32.totalorder %s520, %s534
      %p536 = scmp.eq.s32.totalorder %s35, 0
      %p537 = por %p535, %p536
      %p538 = scmp.le.s32.totalorder 1, %s29
      %p539 = scmp.lt.s32.totalorder %s29, 3
      %p540 = pnand %p538, %p539
      %p541 = pneg %p540
      // Predicated region
      $region9: #{tpu_custom_call.1} parent=5 // pred_check
        _
      $region10: #{tpu_custom_call.1} parent=5 // pred_check_branch
        %543 = sbr.rel (%p540) target = $region12
      $region11: #{tpu_custom_call.1} parent=5 // pred_region
        %s544 = ssub.s32 %s29, 1
        // Predicated region
        $region13: #{tpu_custom_call.1} parent=11 // pred_check
          %p545 = pneg %p50
        $region14: #{tpu_custom_call.1} parent=11 // pred_check_branch
          %547 = sbr.rel (%p545) target = $region16
        $region15: #{tpu_custom_call.1} parent=11 // pred_region
          _
        $region16: #{tpu_custom_call.1} parent=11 // pred_fallthru
          _
        // Predicated region
        $region17: #{tpu_custom_call.1} parent=11 // pred_check
          %p548 = pneg %p71
        $region18: #{tpu_custom_call.1} parent=11 // pred_check_branch
          %550 = sbr.rel (%p548) target = $region20
        $region19: #{tpu_custom_call.1} parent=11 // pred_region
          %552 = vsyncadd [#allocation4], 0
          %s553 = sshll.u32 %s1, 4
          %s554 = int_to_ptr.hbm [resolvable:$true] %s553
          %s555 = sshll.u32 [#allocation3], 4
          %s556 = int_to_ptr.vmem [resolvable:$true] %s555
          %561 = dma.hbm_to_vmem [thread:$0]  %s554, 128, %s556, [#allocation4], 16, 16, 1
        $region20: #{tpu_custom_call.1} parent=11 // pred_fallthru
          _
        // Predicated region
        $region21: #{tpu_custom_call.1} parent=11 // pred_check
          %p562 = pneg %p92
        $region22: #{tpu_custom_call.1} parent=11 // pred_check_branch
          %564 = sbr.rel (%p562) target = $region24
        $region23: #{tpu_custom_call.1} parent=11 // pred_region
          _
        $region24: #{tpu_custom_call.1} parent=11 // pred_fallthru
          _
        // Predicated region
        $region25: #{tpu_custom_call.1} parent=11 // pred_check
          %p565 = pneg %p113
        $region26: #{tpu_custom_call.1} parent=11 // pred_check_branch
          %567 = sbr.rel (%p565) target = $region28
        $region27: #{tpu_custom_call.1} parent=11 // pred_region
          %569 = vsyncadd [#allocation7], 0
          %s571 = sshll.u32 %s3, 4
          %s572 = int_to_ptr.hbm [resolvable:$true] %s571
          %s573 = sshll.u32 [#allocation6], 4
          %s574 = int_to_ptr.vmem [resolvable:$true] %s573
          %576 = dma.hbm_to_vmem [thread:$0]  %s572, 16, %s574, [#allocation7]
        $region28: #{tpu_custom_call.1} parent=11 // pred_fallthru
          _
        // Predicated region
        $region29: #{tpu_custom_call.1} parent=11 // pred_check
          %p577 = pneg %p446
        $region30: #{tpu_custom_call.1} parent=11 // pred_check_branch
          %579 = sbr.rel (%p577) target = $region32
        $region31: #{tpu_custom_call.1} parent=11 // pred_region
          %581 = vsyncadd [#allocation7], 0
          %s582 = sshll.u32 %s16, 4
          %s583 = int_to_ptr.hbm [resolvable:$true] %s582
          %s584 = sshll.u32 [#allocation10], 4
          %s585 = int_to_ptr.vmem [resolvable:$true] %s584
          %590 = dma.hbm_to_vmem [thread:$0]  %s583, 256, %s585, [#allocation7], 64, 64, 4
        $region32: #{tpu_custom_call.1} parent=11 // pred_fallthru
          _
        // Predicated region
        $region33: #{tpu_custom_call.1} parent=11 // pred_check
          %p591 = pneg %p467
        $region34: #{tpu_custom_call.1} parent=11 // pred_check_branch
          %593 = sbr.rel (%p591) target = $region36
        $region35: #{tpu_custom_call.1} parent=11 // pred_region
          _
        $region36: #{tpu_custom_call.1} parent=11 // pred_fallthru
          _
        // Predicated region
        $region37: #{tpu_custom_call.1} parent=11 // pred_check
          %p594 = pneg %p488
        $region38: #{tpu_custom_call.1} parent=11 // pred_check_branch
          %596 = sbr.rel (%p594) target = $region40
        $region39: #{tpu_custom_call.1} parent=11 // pred_region
          _
        $region40: #{tpu_custom_call.1} parent=11 // pred_fallthru
          _
        // Predicated region
        $region41: #{tpu_custom_call.1} parent=11 // pred_check
          %p597 = pneg %p509
        $region42: #{tpu_custom_call.1} parent=11 // pred_check_branch
          %599 = sbr.rel (%p597) target = $region44
        $region43: #{tpu_custom_call.1} parent=11 // pred_region
          _
        $region44: #{tpu_custom_call.1} parent=11 // pred_fallthru
          _
      $region12: #{tpu_custom_call.1} parent=5 // pred_fallthru
        _
      %p600 = scmp.lt.s32.totalorder %s29, 2
      // Predicated region
      $region45: #{tpu_custom_call.1} parent=5 // pred_check
        %p601 = pneg %p600
      $region46: #{tpu_custom_call.1} parent=5 // pred_check_branch
        %603 = sbr.rel (%p601) target = $region48
      $region47: #{tpu_custom_call.1} parent=5 // pred_region
        // Predicated region
        $region49: #{tpu_custom_call.1} parent=47 // pred_check
          %p604 = pneg %p133
        $region50: #{tpu_custom_call.1} parent=47 // pred_check_branch
          %606 = sbr.rel (%p604) target = $region52
        $region51: #{tpu_custom_call.1} parent=47 // pred_region
          %p607 = scmp.lt.s32.totalorder %s29, 1
          %s608 = scalar_select %p607, %s29, 1
          %s609 = smul.addr %s608, 4
          %s610 = smul.addr %s609, 4
          %s611 = scalar_lea.vmem %s4, %s610
        $region52: #{tpu_custom_call.1} parent=47 // pred_fallthru
          _
        // Predicated region
        $region53: #{tpu_custom_call.1} parent=47 // pred_check
          %p612 = pneg %p159
        $region54: #{tpu_custom_call.1} parent=47 // pred_check_branch
          %614 = sbr.rel (%p612) target = $region56
        $region55: #{tpu_custom_call.1} parent=47 // pred_region
          %p615 = scmp.lt.s32.totalorder %s29, 1
          %s616 = scalar_select %p615, %s29, 1
          %s617 = scalar_lea.vmem %s5, %s616
        $region56: #{tpu_custom_call.1} parent=47 // pred_fallthru
          _
        // Predicated region
        $region57: #{tpu_custom_call.1} parent=47 // pred_check
          %p618 = pneg %p185
        $region58: #{tpu_custom_call.1} parent=47 // pred_check_branch
          %620 = sbr.rel (%p618) target = $region60
        $region59: #{tpu_custom_call.1} parent=47 // pred_region
          %p621 = scmp.lt.s32.totalorder %s29, 1
          %s622 = scalar_select %p621, %s29, 1
          %s623 = smul.addr %s622, 4
          %s624 = smul.addr %s623, 4
          %s625 = scalar_lea.vmem %s6, %s624
        $region60: #{tpu_custom_call.1} parent=47 // pred_fallthru
          _
        // Predicated region
        $region61: #{tpu_custom_call.1} parent=47 // pred_check
          %p626 = pneg %p211
        $region62: #{tpu_custom_call.1} parent=47 // pred_check_branch
          %628 = sbr.rel (%p626) target = $region64
        $region63: #{tpu_custom_call.1} parent=47 // pred_region
          %p629 = scmp.lt.s32.totalorder %s29, 1
          %s630 = scalar_select %p629, %s29, 1
          %s631 = scalar_lea.vmem %s7, %s630
        $region64: #{tpu_custom_call.1} parent=47 // pred_fallthru
          _
        // Predicated region
        $region65: #{tpu_custom_call.1} parent=47 // pred_check
          %p632 = pneg %p237
        $region66: #{tpu_custom_call.1} parent=47 // pred_check_branch
          %634 = sbr.rel (%p632) target = $region68
        $region67: #{tpu_custom_call.1} parent=47 // pred_region
          %p635 = scmp.lt.s32.totalorder %s29, 1
          %s636 = scalar_select %p635, %s29, 1
          %s637 = scalar_lea.vmem %s8, %s636
        $region68: #{tpu_custom_call.1} parent=47 // pred_fallthru
          _
        // Predicated region
        $region69: #{tpu_custom_call.1} parent=47 // pred_check
          %p638 = pneg %p263
        $region70: #{tpu_custom_call.1} parent=47 // pred_check_branch
          %640 = sbr.rel (%p638) target = $region72
        $region71: #{tpu_custom_call.1} parent=47 // pred_region
          %s641 = sand.u32 %s29, 1
          %s642 = scalar_lea.sflag [#allocation4], %s641
          %s643 = sand.u32 %s253, 1
          %s644 = scalar_lea.vmem [#allocation8], %s643
          %646 = vsyncadd %s642, 0
          %s647 = scalar_lea.hbm %s9, %s29
          %s649 = sshll.u32 %s647, 4
          %s650 = int_to_ptr.hbm [resolvable:$true] %s649
          %s651 = sshll.u32 %s644, 4
          %s652 = int_to_ptr.vmem [resolvable:$true] %s651
          %654 = dma.hbm_to_vmem [thread:$0]  %s650, 16, %s652, %s642
        $region72: #{tpu_custom_call.1} parent=47 // pred_fallthru
          _
        // Predicated region
        $region73: #{tpu_custom_call.1} parent=47 // pred_check
          %p655 = pneg %p289
        $region74: #{tpu_custom_call.1} parent=47 // pred_check_branch
          %657 = sbr.rel (%p655) target = $region76
        $region75: #{tpu_custom_call.1} parent=47 // pred_region
          %p658 = scmp.lt.s32.totalorder %s29, 1
          %s659 = scalar_select %p658, %s29, 1
          %s660 = smul.addr %s659, 4
          %s661 = smul.addr %s660, 4
          %s662 = scalar_lea.vmem %s10, %s661
        $region76: #{tpu_custom_call.1} parent=47 // pred_fallthru
          _
        // Predicated region
        $region77: #{tpu_custom_call.1} parent=47 // pred_check
          %p663 = pneg %p315
        $region78: #{tpu_custom_call.1} parent=47 // pred_check_branch
          %665 = sbr.rel (%p663) target = $region80
        $region79: #{tpu_custom_call.1} parent=47 // pred_region
          %p666 = scmp.lt.s32.totalorder %s29, 1
          %s667 = scalar_select %p666, %s29, 1
          %s668 = scalar_lea.vmem %s11, %s667
        $region80: #{tpu_custom_call.1} parent=47 // pred_fallthru
          _
        // Predicated region
        $region81: #{tpu_custom_call.1} parent=47 // pred_check
          %p669 = pneg %p341
        $region82: #{tpu_custom_call.1} parent=47 // pred_check_branch
          %671 = sbr.rel (%p669) target = $region84
        $region83: #{tpu_custom_call.1} parent=47 // pred_region
          %p672 = scmp.lt.s32.totalorder %s29, 1
          %s673 = scalar_select %p672, %s29, 1
          %s674 = smul.addr %s673, 8
          %s675 = smul.addr %s674, 4
          %s676 = scalar_lea.vmem %s12, %s675
        $region84: #{tpu_custom_call.1} parent=47 // pred_fallthru
          _
        // Predicated region
        $region85: #{tpu_custom_call.1} parent=47 // pred_check
          %p677 = pneg %p367
        $region86: #{tpu_custom_call.1} parent=47 // pred_check_branch
          %679 = sbr.rel (%p677) target = $region88
        $region87: #{tpu_custom_call.1} parent=47 // pred_region
          %p680 = scmp.lt.s32.totalorder %s29, 1
          %s681 = scalar_select %p680, %s29, 1
          %s682 = scalar_lea.vmem %s13, %s681
        $region88: #{tpu_custom_call.1} parent=47 // pred_fallthru
          _
        // Predicated region
        $region89: #{tpu_custom_call.1} parent=47 // pred_check
          %p683 = pneg %p393
        $region90: #{tpu_custom_call.1} parent=47 // pred_check_branch
          %685 = sbr.rel (%p683) target = $region92
        $region91: #{tpu_custom_call.1} parent=47 // pred_region
          %p686 = scmp.lt.s32.totalorder %s29, 1
          %s687 = scalar_select %p686, %s29, 1
          %s688 = scalar_lea.vmem %s14, %s687
        $region92: #{tpu_custom_call.1} parent=47 // pred_fallthru
          _
        // Predicated region
        $region93: #{tpu_custom_call.1} parent=47 // pred_check
          %p689 = pneg %p419
        $region94: #{tpu_custom_call.1} parent=47 // pred_check_branch
          %691 = sbr.rel (%p689) target = $region96
        $region95: #{tpu_custom_call.1} parent=47 // pred_region
          %s692 = sand.u32 %s29, 1
          %s693 = scalar_lea.sflag [#allocation4], %s692
          %s694 = sand.u32 %s409, 1
          %s695 = scalar_lea.vmem [#allocation9], %s694
          %697 = vsyncadd %s693, 0
          %s698 = scalar_lea.hbm %s15, %s29
          %s700 = sshll.u32 %s698, 4
          %s701 = int_to_ptr.hbm [resolvable:$true] %s700
          %s702 = sshll.u32 %s695, 4
          %s703 = int_to_ptr.vmem [resolvable:$true] %s702
          %705 = dma.hbm_to_vmem [thread:$0]  %s701, 16, %s703, %s693
        $region96: #{tpu_custom_call.1} parent=47 // pred_fallthru
          _
      $region48: #{tpu_custom_call.1} parent=5 // pred_fallthru
        _
      %p706 = scmp.le.s32.totalorder 1, %s29
      %p707 = scmp.lt.s32.totalorder %s29, 3
      %p708 = pnand %p706, %p707
      %p709 = pneg %p708
      // Predicated region
      $region97: #{tpu_custom_call.1} parent=5 // pred_check
        _
      $region98: #{tpu_custom_call.1} parent=5 // pred_check_branch
        %711 = sbr.rel (%p708) target = $region100
      $region99: #{tpu_custom_call.1} parent=5 // pred_region
        %s712 = ssub.s32 %s29, 1
        // Predicated region
        $region101: #{tpu_custom_call.1} parent=99 // pred_check
          %p713 = pneg %p71
        $region102: #{tpu_custom_call.1} parent=99 // pred_check_branch
          %715 = sbr.rel (%p713) target = $region104
        $region103: #{tpu_custom_call.1} parent=99 // pred_region
          %717 = dma.done [#allocation4], 128
        $region104: #{tpu_custom_call.1} parent=99 // pred_fallthru
          _
        // Predicated region
        $region105: #{tpu_custom_call.1} parent=99 // pred_check
          %p718 = pneg %p113
        $region106: #{tpu_custom_call.1} parent=99 // pred_check_branch
          %720 = sbr.rel (%p718) target = $region108
        $region107: #{tpu_custom_call.1} parent=99 // pred_region
          %722 = dma.done [#allocation7], 16
        $region108: #{tpu_custom_call.1} parent=99 // pred_fallthru
          _
        %s723 = sand.u32 %s34, 1
        %s724 = scalar_lea.sflag [#allocation4], %s723
        %s725 = sand.u32 %s256, 1
        %s726 = scalar_lea.vmem [#allocation8], %s725
        // Predicated region
        $region109: #{tpu_custom_call.1} parent=99 // pred_check
          %p727 = pneg %p269
        $region110: #{tpu_custom_call.1} parent=99 // pred_check_branch
          %729 = sbr.rel (%p727) target = $region112
        $region111: #{tpu_custom_call.1} parent=99 // pred_region
          %731 = dma.done %s724, 16
        $region112: #{tpu_custom_call.1} parent=99 // pred_fallthru
          _
        %s732 = sand.u32 %s34, 1
        %s733 = scalar_lea.sflag [#allocation4], %s732
        %s734 = sand.u32 %s412, 1
        %s735 = scalar_lea.vmem [#allocation9], %s734
        // Predicated region
        $region113: #{tpu_custom_call.1} parent=99 // pred_check
          %p736 = pneg %p425
        $region114: #{tpu_custom_call.1} parent=99 // pred_check_branch
          %738 = sbr.rel (%p736) target = $region116
        $region115: #{tpu_custom_call.1} parent=99 // pred_region
          %740 = dma.done %s733, 16
        $region116: #{tpu_custom_call.1} parent=99 // pred_fallthru
          _
        // Predicated region
        $region117: #{tpu_custom_call.1} parent=99 // pred_check
          %p741 = pneg %p446
        $region118: #{tpu_custom_call.1} parent=99 // pred_check_branch
          %743 = sbr.rel (%p741) target = $region120
        $region119: #{tpu_custom_call.1} parent=99 // pred_region
          %745 = dma.done [#allocation7], 256
        $region120: #{tpu_custom_call.1} parent=99 // pred_fallthru
          _
        %p746 = pneg %p50
        %p747 = pneg %p47
        %p748 = pneg %p71
        %p749 = pneg %p68
        %p750 = pneg %p92
        %p751 = pneg %p89
        %p752 = pneg %p113
        %p753 = pneg %p110
        %p754 = scmp.lt.s32.totalorder %s34, 1
        %s755 = scalar_select %p754, %s34, 1
        %s756 = smul.addr %s755, 4
        %s757 = smul.addr %s756, 4
        %s758 = scalar_lea.vmem %s4, %s757
        %p759 = pneg %p139
        %p760 = pneg %p136
        %p761 = scmp.lt.s32.totalorder %s34, 1
        %s762 = scalar_select %p761, %s34, 1
        %s763 = scalar_lea.vmem %s5, %s762
        %p764 = pneg %p165
        %p765 = pneg %p162
        %p766 = scmp.lt.s32.totalorder %s34, 1
        %s767 = scalar_select %p766, %s34, 1
        %s768 = smul.addr %s767, 4
        %s769 = smul.addr %s768, 4
        %s770 = scalar_lea.vmem %s6, %s769
        %p771 = pneg %p191
        %p772 = pneg %p188
        %p773 = scmp.lt.s32.totalorder %s34, 1
        %s774 = scalar_select %p773, %s34, 1
        %s775 = scalar_lea.vmem %s7, %s774
        %p776 = pneg %p217
        %p777 = pneg %p214
        %p778 = scmp.lt.s32.totalorder %s34, 1
        %s779 = scalar_select %p778, %s34, 1
        %s780 = scalar_lea.vmem %s8, %s779
        %p781 = pneg %p243
        %p782 = pneg %p240
        %s783 = sand.u32 %s34, 1
        %s784 = scalar_lea.sflag [#allocation4], %s783
        %s785 = sand.u32 %s256, 1
        %s786 = scalar_lea.vmem [#allocation8], %s785
        %p787 = pneg %p269
        %p788 = pneg %p266
        %p789 = scmp.lt.s32.totalorder %s34, 1
        %s790 = scalar_select %p789, %s34, 1
        %s791 = smul.addr %s790, 4
        %s792 = smul.addr %s791, 4
        %s793 = scalar_lea.vmem %s10, %s792
        %p794 = pneg %p295
        %p795 = pneg %p292
        %p796 = scmp.lt.s32.totalorder %s34, 1
        %s797 = scalar_select %p796, %s34, 1
        %s798 = scalar_lea.vmem %s11, %s797
        %p799 = pneg %p321
        %p800 = pneg %p318
        %p801 = scmp.lt.s32.totalorder %s34, 1
        %s802 = scalar_select %p801, %s34, 1
        %s803 = smul.addr %s802, 8
        %s804 = smul.addr %s803, 4
        %s805 = scalar_lea.vmem %s12, %s804
        %p806 = pneg %p347
        %p807 = pneg %p344
        %p808 = scmp.lt.s32.totalorder %s34, 1
        %s809 = scalar_select %p808, %s34, 1
        %s810 = scalar_lea.vmem %s13, %s809
        %p811 = pneg %p373
        %p812 = pneg %p370
        %p813 = scmp.lt.s32.totalorder %s34, 1
        %s814 = scalar_select %p813, %s34, 1
        %s815 = scalar_lea.vmem %s14, %s814
        %p816 = pneg %p399
        %p817 = pneg %p396
        %s818 = sand.u32 %s34, 1
        %s819 = scalar_lea.sflag [#allocation4], %s818
        %s820 = sand.u32 %s412, 1
        %s821 = scalar_lea.vmem [#allocation9], %s820
        %p822 = pneg %p425
        %p823 = pneg %p422
        %p824 = pneg %p446
        %p825 = pneg %p443
        %p826 = pneg %p467
        %p827 = pneg %p464
        %p828 = pneg %p488
        %p829 = pneg %p485
        %p830 = pneg %p509
        %p831 = pneg %p506
        %p832 = pneg %p530
        %p833 = pneg %p527
        %p834 = scmp.lt.s32.totalorder %s34, 1
        %s835 = scalar_select %p834, %s34, 1
        %s836 = smul.addr %s835, 4
        %s837 = smul.addr %s836, 4
        %s838 = scalar_lea.vmem %s4, %s837
        %p839 = scmp.lt.s32.totalorder %s34, 1
        %s840 = scalar_select %p839, %s34, 1
        %s841 = scalar_lea.vmem %s5, %s840
        %p842 = scmp.lt.s32.totalorder %s34, 1
        %s843 = scalar_select %p842, %s34, 1
        %s844 = smul.addr %s843, 4
        %s845 = smul.addr %s844, 4
        %s846 = scalar_lea.vmem %s6, %s845
        %p847 = scmp.lt.s32.totalorder %s34, 1
        %s848 = scalar_select %p847, %s34, 1
        %s849 = scalar_lea.vmem %s7, %s848
        %p850 = scmp.lt.s32.totalorder %s34, 1
        %s851 = scalar_select %p850, %s34, 1
        %s852 = scalar_lea.vmem %s8, %s851
        %p853 = scmp.lt.s32.totalorder %s34, 1
        %s854 = scalar_select %p853, %s34, 1
        %s855 = smul.addr %s854, 4
        %s856 = smul.addr %s855, 4
        %s857 = scalar_lea.vmem %s10, %s856
        %p858 = scmp.lt.s32.totalorder %s34, 1
        %s859 = scalar_select %p858, %s34, 1
        %s860 = scalar_lea.vmem %s11, %s859
        %p861 = scmp.lt.s32.totalorder %s34, 1
        %s862 = scalar_select %p861, %s34, 1
        %s863 = smul.addr %s862, 8
        %s864 = smul.addr %s863, 4
        %s865 = scalar_lea.vmem %s12, %s864
        %p866 = scmp.lt.s32.totalorder %s34, 1
        %s867 = scalar_select %p866, %s34, 1
        %s868 = scalar_lea.vmem %s13, %s867
        %p869 = scmp.lt.s32.totalorder %s34, 1
        %s870 = scalar_select %p869, %s34, 1
        %s871 = scalar_lea.vmem %s14, %s870
        %p873 = scmp.eq.s32.totalorder %s34, 0
        // Predicated region
        $region121: #{tpu_custom_call.1} parent=99 // pred_check
          %p874 = pneg %p873
        $region122: #{tpu_custom_call.1} parent=99 // pred_check_branch
          %876 = sbr.rel (%p874) target = $region124
        $region123: #{tpu_custom_call.1} parent=99 // pred_region
          %v877 = vld [vmem:[%s0] sm:$0xff]
          %v878 = vld [vmem:[%s0 + $0x8] sm:$0xff]
          %v879 = vld [vmem:[%s2] sm:$0x1]
          %v880 = vld [vmem:[#allocation6] sm:$0x1]
          %vm881 = vcmask 261120
          %v882 = vsel %vm881, %v877, 0.0
          %883 = vadd.xlane.f32.xlu0 %v882
          %v884 = vpop.xlane.xlu0 %883
          %v885 = vsel %vm881, %v878, 0.0
          %886 = vadd.xlane.f32.xlu0 %v885
          %v887 = vpop.xlane.xlu0 %886
          %v888 = vrcp.pop 32.0
          %v889 = vmul.f32 32.0, %v888
          %v890 = vsub.f32 1.0, %v889
          %v891 = vmul.f32 %v888, %v890
          %v892 = vadd.f32 %v888, %v891
          %vm893 = vweird.f32 %v888
          %v894 = vsel %vm893, %v888, %v892
          %v895 = vmul.f32 %v884, %v894
          %v896 = vmul.f32 %v887, %v894
          %v897 = vsub.f32 %v877, %v895
          %v898 = vsub.f32 %v878, %v896
          %v899 = vmul.f32 %v897, %v897
          %v900 = vmul.f32 %v898, %v898
          %v901 = vsel %vm881, %v899, 0.0
          %902 = vadd.xlane.f32.xlu0 %v901
          %v903 = vpop.xlane.xlu0 %902
          %v904 = vsel %vm881, %v900, 0.0
          %905 = vadd.xlane.f32.xlu0 %v904
          %v906 = vpop.xlane.xlu0 %905
          %v907 = vmul.f32 %v903, %v894
          %v908 = vmul.f32 %v906, %v894
          %v909 = vadd.f32 %v907, 1e-05
          %v910 = vadd.f32 %v908, 1e-05
          %v911 = vrsqrt.pop %v909
          %v912 = vmul.f32 %v911, %v909
          %v913 = vmul.f32 %v912, %v911
          %v914 = vmul.f32 0.5, %v913
          %v915 = vsub.f32 1.5, %v914
          %v916 = vmul.f32 %v911, %v915
          %vm917 = vweird.f32 %v909
          %vm918 = vweird.f32 %v911
          %vm919 = vmor %vm917, %vm918
          %v920 = vsel %vm919, %v911, %v916
          %v921 = vrsqrt.pop %v910
          %v922 = vmul.f32 %v921, %v910
          %v923 = vmul.f32 %v922, %v921
          %v924 = vmul.f32 0.5, %v923
          %v925 = vsub.f32 1.5, %v924
          %v926 = vmul.f32 %v921, %v925
          %vm927 = vweird.f32 %v910
          %vm928 = vweird.f32 %v921
          %vm929 = vmor %vm927, %vm928
          %v930 = vsel %vm929, %v921, %v926
          %v931 = vmul.f32 %v897, %v920
          %v932 = vmul.f32 %v898, %v930
          %v934 = vperm.slane %v879, 0
          %v936 = vmul.f32 %v931, %v934
          %v937 = vmul.f32 %v932, %v934
          %v939 = vperm.slane %v880, 0
          %v941 = vadd.f32 %v936, %v939
          %v942 = vadd.f32 %v937, %v939
          %943 = vst.msk [vmem:[#allocation2] sm:$0xff] %vm881, %v941
          %944 = vst.msk [vmem:[#allocation2 + $0x8] sm:$0xff] %vm881, %v942
        $region124: #{tpu_custom_call.1} parent=99 // pred_fallthru
          _
        %v945 = vld [vmem:[#allocation2] sm:$0xff]
        %v946 = vld [vmem:[#allocation2 + $0x8] sm:$0xff]
        %v947 = vpack.c.bf16 %v946, %v945
        %v948 = vld [vmem:[%s838] sm:$0xf]
        %v949 = vld [vmem:[%s838 + $0x4] sm:$0xf]
        %v950 = vld [vmem:[%s838 + $0x8] sm:$0xf]
        %v951 = vld [vmem:[%s838 + $0xc] sm:$0xf]
        %v952 = vld [vmem:[%s841] sm:$0x1]
        %v954 = vperm.slane %v952, 0
        %v960 = vunpack.c.l.b16 %v948
        %v961 = vunpack.c.l.b16 %v949
        %v962 = vunpack.c.l.b16 %v950
        %v963 = vunpack.c.l.b16 %v951
        %v964 = vpack.c.b16 %v961, %v960
        %v965 = vpack.c.b16 %v963, %v962
        %vm968 = vcmask 261120
        %v970 = vsel %vm968, %v947, 0
        %972 = vmatpush.bf16.msra.mxu0 0
        %973 = vmatpush.bf16.msra.mxu0 0
        %974 = vmatpush.bf16.msra.mxu0 0
        %975 = vmatpush.bf16.msra.mxu0 0
        %976 = vmatpush.bf16.msra.mxu0 0
        %977 = vmatpush.bf16.msra.mxu0 0
        %978 = vmatpush.bf16.msra.mxu0 %v965
        %979 = vmatpush.bf16.msra.mxu0 %v964
        %980 = vmatmul.bf16.gmra.mxu0 %v970
        %v981 = vpop.f32.mrf.mxu0
        %v982 = vadd.f32 %v954, %v981
        %v983 = vpop.f32.mrf.mxu0
        %v984 = vadd.f32 %v954, %v983
        %985 = vdwg.mxu0
        %988 = vrot.lane.b32.xlu0 %v982, 120
        %v989 = vpop.permute.xlu0 %988
        %990 = vrot.lane.b32.xlu0 %v984, 120
        %v991 = vpop.permute.xlu0 %990
        %994 = vrot.lane.b32.xlu0 %v982, 112
        %v995 = vpop.permute.xlu0 %994
        %996 = vrot.lane.b32.xlu0 %v984, 112
        %v997 = vpop.permute.xlu0 %996
        %1000 = vrot.lane.b32.xlu0 %v982, 104
        %v1001 = vpop.permute.xlu0 %1000
        %1002 = vrot.lane.b32.xlu0 %v984, 104
        %v1003 = vpop.permute.xlu0 %1002
        %v1006 = vmul.f32 %v982, 0.35355338
        %v1007 = vmul.f32 %v984, 0.35355338
        %v1008 = vmul.f32 %v989, 0.35355338
        %v1009 = vmul.f32 %v991, 0.35355338
        %v1010 = vmul.f32 %v995, 0.35355338
        %v1011 = vmul.f32 %v997, 0.35355338
        %v1012 = vmul.f32 %v1001, 0.35355338
        %v1013 = vmul.f32 %v1003, 0.35355338
        %v1014 = vpack.c.bf16 %v1006, %v1006
        %v1015 = vpack.c.bf16 %v1007, %v1007
        %v1016 = vpack.c.bf16 %v1008, %v1008
        %v1017 = vpack.c.bf16 %v1009, %v1009
        %v1018 = vpack.c.bf16 %v1010, %v1010
        %v1019 = vpack.c.bf16 %v1011, %v1011
        %v1020 = vpack.c.bf16 %v1012, %v1012
        %v1021 = vpack.c.bf16 %v1013, %v1013
        %v1022 = vpack.c.bf16 %v982, %v982
        %v1023 = vpack.c.bf16 %v984, %v984
        %v1024 = vpack.c.bf16 %v989, %v989
        %v1025 = vpack.c.bf16 %v991, %v991
        %v1026 = vpack.c.bf16 %v995, %v995
        %v1027 = vpack.c.bf16 %v997, %v997
        %v1028 = vpack.c.bf16 %v1001, %v1001
        %v1029 = vpack.c.bf16 %v1003, %v1003
        %v1030 = vld [vmem:[#allocation3] sm:$0x1]
        %v1031 = vld [vmem:[#allocation3 + $0x1] sm:$0x1]
        %v1032 = vld [vmem:[#allocation3 + $0x2] sm:$0x1]
        %v1033 = vld [vmem:[#allocation3 + $0x3] sm:$0x1]
        %v1034 = vld [vmem:[#allocation3 + $0x4] sm:$0x1]
        %v1035 = vld [vmem:[#allocation3 + $0x5] sm:$0x1]
        %v1036 = vld [vmem:[#allocation3 + $0x6] sm:$0x1]
        %v1037 = vld [vmem:[#allocation3 + $0x7] sm:$0x1]
        %v1046 = vperm.slane %v1030, 0
        %v1047 = vperm.slane %v1031, 0
        %v1048 = vperm.slane %v1032, 0
        %v1049 = vperm.slane %v1033, 0
        %v1050 = vperm.slane %v1034, 0
        %v1051 = vperm.slane %v1035, 0
        %v1052 = vperm.slane %v1036, 0
        %v1053 = vperm.slane %v1037, 0
        %v1063 = vunpack.c.l.b16 %v1022
        %v1064 = vpack.c.b16 %v1063, %v1063
        %1065 = vrot.lane.b32.xlu0 %v1064, 96
        %v1066 = vpop.permute.xlu0 %1065
        %vm1067 = vcmask 64512
        %v1069 = vsel %vm1067, %v1014, 0
        %v1072 = vsel %vm1067, %v1066, 0
        %1074 = vmatpush.bf16.xpose.msra.mxu0 0
        %1075 = vmatpush.bf16.xpose.msra.mxu0 0
        %1076 = vmatpush.bf16.xpose.msra.mxu0 0
        %1077 = vmatpush.bf16.xpose.msra.mxu0 0
        %1078 = vmatpush.bf16.xpose.msra.mxu0 0
        %1079 = vmatpush.bf16.xpose.msra.mxu0 0
        %1080 = vmatpush.bf16.xpose.msra.mxu0 0
        %1081 = vmatpush.bf16.xpose.msra.mxu0 %v1072
        %1082 = vmatmul.bf16.gmra.mxu0 %v1069
        %v1083 = vpop.f32.mrf.mxu0
        %v1084 = vadd.f32 %v1046, %v1083
        %v1085 = vpop.f32.mrf.mxu0
        %1086 = vdwg.mxu0
        %v1088 = vunpack.c.l.b16 %v1023
        %v1089 = vpack.c.b16 %v1088, %v1088
        %1090 = vrot.lane.b32.xlu0 %v1089, 96
        %v1091 = vpop.permute.xlu0 %1090
        %v1093 = vsel %vm1067, %v1015, 0
        %v1096 = vsel %vm1067, %v1091, 0
        %1098 = vmatpush.bf16.xpose.msra.mxu0 0
        %1099 = vmatpush.bf16.xpose.msra.mxu0 0
        %1100 = vmatpush.bf16.xpose.msra.mxu0 0
        %1101 = vmatpush.bf16.xpose.msra.mxu0 0
        %1102 = vmatpush.bf16.xpose.msra.mxu0 0
        %1103 = vmatpush.bf16.xpose.msra.mxu0 0
        %1104 = vmatpush.bf16.xpose.msra.mxu0 0
        %1105 = vmatpush.bf16.xpose.msra.mxu0 %v1096
        %1106 = vmatmul.bf16.gmra.mxu0 %v1093
        %v1107 = vpop.f32.mrf.mxu0
        %v1108 = vadd.f32 %v1047, %v1107
        %v1109 = vpop.f32.mrf.mxu0
        %1110 = vdwg.mxu0
        %v1112 = vunpack.c.l.b16 %v1024
        %v1113 = vpack.c.b16 %v1112, %v1112
        %1114 = vrot.lane.b32.xlu0 %v1113, 96
        %v1115 = vpop.permute.xlu0 %1114
        %v1117 = vsel %vm1067, %v1016, 0
        %v1120 = vsel %vm1067, %v1115, 0
        %1122 = vmatpush.bf16.xpose.msra.mxu0 0
        %1123 = vmatpush.bf16.xpose.msra.mxu0 0
        %1124 = vmatpush.bf16.xpose.msra.mxu0 0
        %1125 = vmatpush.bf16.xpose.msra.mxu0 0
        %1126 = vmatpush.bf16.xpose.msra.mxu0 0
        %1127 = vmatpush.bf16.xpose.msra.mxu0 0
        %1128 = vmatpush.bf16.xpose.msra.mxu0 0
        %1129 = vmatpush.bf16.xpose.msra.mxu0 %v1120
        %1130 = vmatmul.bf16.gmra.mxu0 %v1117
        %v1131 = vpop.f32.mrf.mxu0
        %v1132 = vadd.f32 %v1048, %v1131
        %v1133 = vpop.f32.mrf.mxu0
        %1134 = vdwg.mxu0
        %v1136 = vunpack.c.l.b16 %v1025
        %v1137 = vpack.c.b16 %v1136, %v1136
        %1138 = vrot.lane.b32.xlu0 %v1137, 96
        %v1139 = vpop.permute.xlu0 %1138
        %v1141 = vsel %vm1067, %v1017, 0
        %v1144 = vsel %vm1067, %v1139, 0
        %1146 = vmatpush.bf16.xpose.msra.mxu0 0
        %1147 = vmatpush.bf16.xpose.msra.mxu0 0
        %1148 = vmatpush.bf16.xpose.msra.mxu0 0
        %1149 = vmatpush.bf16.xpose.msra.mxu0 0
        %1150 = vmatpush.bf16.xpose.msra.mxu0 0
        %1151 = vmatpush.bf16.xpose.msra.mxu0 0
        %1152 = vmatpush.bf16.xpose.msra.mxu0 0
        %1153 = vmatpush.bf16.xpose.msra.mxu0 %v1144
        %1154 = vmatmul.bf16.gmra.mxu0 %v1141
        %v1155 = vpop.f32.mrf.mxu0
        %v1156 = vadd.f32 %v1049, %v1155
        %v1157 = vpop.f32.mrf.mxu0
        %1158 = vdwg.mxu0
        %v1160 = vunpack.c.l.b16 %v1026
        %v1161 = vpack.c.b16 %v1160, %v1160
        %1162 = vrot.lane.b32.xlu0 %v1161, 96
        %v1163 = vpop.permute.xlu0 %1162
        %v1165 = vsel %vm1067, %v1018, 0
        %v1168 = vsel %vm1067, %v1163, 0
        %1170 = vmatpush.bf16.xpose.msra.mxu0 0
        %1171 = vmatpush.bf16.xpose.msra.mxu0 0
        %1172 = vmatpush.bf16.xpose.msra.mxu0 0
        %1173 = vmatpush.bf16.xpose.msra.mxu0 0
        %1174 = vmatpush.bf16.xpose.msra.mxu0 0
        %1175 = vmatpush.bf16.xpose.msra.mxu0 0
        %1176 = vmatpush.bf16.xpose.msra.mxu0 0
        %1177 = vmatpush.bf16.xpose.msra.mxu0 %v1168
        %1178 = vmatmul.bf16.gmra.mxu0 %v1165
        %v1179 = vpop.f32.mrf.mxu0
        %v1180 = vadd.f32 %v1050, %v1179
        %v1181 = vpop.f32.mrf.mxu0
        %1182 = vdwg.mxu0
        %v1184 = vunpack.c.l.b16 %v1027
        %v1185 = vpack.c.b16 %v1184, %v1184
        %1186 = vrot.lane.b32.xlu0 %v1185, 96
        %v1187 = vpop.permute.xlu0 %1186
        %v1189 = vsel %vm1067, %v1019, 0
        %v1192 = vsel %vm1067, %v1187, 0
        %1194 = vmatpush.bf16.xpose.msra.mxu0 0
        %1195 = vmatpush.bf16.xpose.msra.mxu0 0
        %1196 = vmatpush.bf16.xpose.msra.mxu0 0
        %1197 = vmatpush.bf16.xpose.msra.mxu0 0
        %1198 = vmatpush.bf16.xpose.msra.mxu0 0
        %1199 = vmatpush.bf16.xpose.msra.mxu0 0
        %1200 = vmatpush.bf16.xpose.msra.mxu0 0
        %1201 = vmatpush.bf16.xpose.msra.mxu0 %v1192
        %1202 = vmatmul.bf16.gmra.mxu0 %v1189
        %v1203 = vpop.f32.mrf.mxu0
        %v1204 = vadd.f32 %v1051, %v1203
        %v1205 = vpop.f32.mrf.mxu0
        %1206 = vdwg.mxu0
        %v1208 = vunpack.c.l.b16 %v1028
        %v1209 = vpack.c.b16 %v1208, %v1208
        %1210 = vrot.lane.b32.xlu0 %v1209, 96
        %v1211 = vpop.permute.xlu0 %1210
        %v1213 = vsel %vm1067, %v1020, 0
        %v1216 = vsel %vm1067, %v1211, 0
        %1218 = vmatpush.bf16.xpose.msra.mxu0 0
        %1219 = vmatpush.bf16.xpose.msra.mxu0 0
        %1220 = vmatpush.bf16.xpose.msra.mxu0 0
        %1221 = vmatpush.bf16.xpose.msra.mxu0 0
        %1222 = vmatpush.bf16.xpose.msra.mxu0 0
        %1223 = vmatpush.bf16.xpose.msra.mxu0 0
        %1224 = vmatpush.bf16.xpose.msra.mxu0 0
        %1225 = vmatpush.bf16.xpose.msra.mxu0 %v1216
        %1226 = vmatmul.bf16.gmra.mxu0 %v1213
        %v1227 = vpop.f32.mrf.mxu0
        %v1228 = vadd.f32 %v1052, %v1227
        %v1229 = vpop.f32.mrf.mxu0
        %1230 = vdwg.mxu0
        %v1232 = vunpack.c.l.b16 %v1029
        %v1233 = vpack.c.b16 %v1232, %v1232
        %1234 = vrot.lane.b32.xlu0 %v1233, 96
        %v1235 = vpop.permute.xlu0 %1234
        %v1237 = vsel %vm1067, %v1021, 0
        %v1240 = vsel %vm1067, %v1235, 0
        %1242 = vmatpush.bf16.xpose.msra.mxu0 0
        %1243 = vmatpush.bf16.xpose.msra.mxu0 0
        %1244 = vmatpush.bf16.xpose.msra.mxu0 0
        %1245 = vmatpush.bf16.xpose.msra.mxu0 0
        %1246 = vmatpush.bf16.xpose.msra.mxu0 0
        %1247 = vmatpush.bf16.xpose.msra.mxu0 0
        %1248 = vmatpush.bf16.xpose.msra.mxu0 0
        %1249 = vmatpush.bf16.xpose.msra.mxu0 %v1240
        %1250 = vmatmul.bf16.gmra.mxu0 %v1237
        %v1251 = vpop.f32.mrf.mxu0
        %v1252 = vadd.f32 %v1053, %v1251
        %v1253 = vpop.f32.mrf.mxu0
        %1254 = vdwg.mxu0
        %v1255 = vsel %vm1067, %v1084, -inf
        %1256 = vmax.xlane.f32.xlu0 %v1255
        %v1257 = vpop.xlane.xlu0 %1256
        %v1258 = vsel %vm1067, %v1108, -inf
        %1259 = vmax.xlane.f32.xlu0 %v1258
        %v1260 = vpop.xlane.xlu0 %1259
        %v1261 = vsel %vm1067, %v1132, -inf
        %1262 = vmax.xlane.f32.xlu0 %v1261
        %v1263 = vpop.xlane.xlu0 %1262
        %v1264 = vsel %vm1067, %v1156, -inf
        %1265 = vmax.xlane.f32.xlu0 %v1264
        %v1266 = vpop.xlane.xlu0 %1265
        %v1267 = vsel %vm1067, %v1180, -inf
        %1268 = vmax.xlane.f32.xlu0 %v1267
        %v1269 = vpop.xlane.xlu0 %1268
        %v1270 = vsel %vm1067, %v1204, -inf
        %1271 = vmax.xlane.f32.xlu0 %v1270
        %v1272 = vpop.xlane.xlu0 %1271
        %v1273 = vsel %vm1067, %v1228, -inf
        %1274 = vmax.xlane.f32.xlu0 %v1273
        %v1275 = vpop.xlane.xlu0 %1274
        %v1276 = vsel %vm1067, %v1252, -inf
        %1277 = vmax.xlane.f32.xlu0 %v1276
        %v1278 = vpop.xlane.xlu0 %1277
        %v1279 = vsub.f32 %v1084, %v1257
        %v1280 = vsub.f32 %v1108, %v1260
        %v1281 = vsub.f32 %v1132, %v1263
        %v1282 = vsub.f32 %v1156, %v1266
        %v1283 = vsub.f32 %v1180, %v1269
        %v1284 = vsub.f32 %v1204, %v1272
        %v1285 = vsub.f32 %v1228, %v1275
        %v1286 = vsub.f32 %v1252, %v1278
        %v1287 = vmul.f32 %v1279, 1.442695
        %v1288 = vpow.pop %v1287
        %v1289 = vmul.f32 %v1280, 1.442695
        %v1290 = vpow.pop %v1289
        %v1291 = vmul.f32 %v1281, 1.442695
        %v1292 = vpow.pop %v1291
        %v1293 = vmul.f32 %v1282, 1.442695
        %v1294 = vpow.pop %v1293
        %v1295 = vmul.f32 %v1283, 1.442695
        %v1296 = vpow.pop %v1295
        %v1297 = vmul.f32 %v1284, 1.442695
        %v1298 = vpow.pop %v1297
        %v1299 = vmul.f32 %v1285, 1.442695
        %v1300 = vpow.pop %v1299
        %v1301 = vmul.f32 %v1286, 1.442695
        %v1302 = vpow.pop %v1301
        %v1303 = vsel %vm1067, %v1288, 0.0
        %1304 = vadd.xlane.f32.xlu0 %v1303
        %v1305 = vpop.xlane.xlu0 %1304
        %v1306 = vsel %vm1067, %v1290, 0.0
        %1307 = vadd.xlane.f32.xlu0 %v1306
        %v1308 = vpop.xlane.xlu0 %1307
        %v1309 = vsel %vm1067, %v1292, 0.0
        %1310 = vadd.xlane.f32.xlu0 %v1309
        %v1311 = vpop.xlane.xlu0 %1310
        %v1312 = vsel %vm1067, %v1294, 0.0
        %1313 = vadd.xlane.f32.xlu0 %v1312
        %v1314 = vpop.xlane.xlu0 %1313
        %v1315 = vsel %vm1067, %v1296, 0.0
        %1316 = vadd.xlane.f32.xlu0 %v1315
        %v1317 = vpop.xlane.xlu0 %1316
        %v1318 = vsel %vm1067, %v1298, 0.0
        %1319 = vadd.xlane.f32.xlu0 %v1318
        %v1320 = vpop.xlane.xlu0 %1319
        %v1321 = vsel %vm1067, %v1300, 0.0
        %1322 = vadd.xlane.f32.xlu0 %v1321
        %v1323 = vpop.xlane.xlu0 %1322
        %v1324 = vsel %vm1067, %v1302, 0.0
        %1325 = vadd.xlane.f32.xlu0 %v1324
        %v1326 = vpop.xlane.xlu0 %1325
        %v1327 = vrcp.pop %v1305
        %v1328 = vrcp.pop %v1308
        %v1329 = vrcp.pop %v1311
        %v1330 = vrcp.pop %v1314
        %v1331 = vrcp.pop %v1317
        %v1332 = vrcp.pop %v1320
        %v1333 = vrcp.pop %v1323
        %v1334 = vrcp.pop %v1326
        %v1335 = vmul.f32 %v1288, %v1327
        %v1336 = vmul.f32 %v1290, %v1328
        %v1337 = vmul.f32 %v1292, %v1329
        %v1338 = vmul.f32 %v1294, %v1330
        %v1339 = vmul.f32 %v1296, %v1331
        %v1340 = vmul.f32 %v1298, %v1332
        %v1341 = vmul.f32 %v1300, %v1333
        %v1342 = vmul.f32 %v1302, %v1334
        %v1343 = vpack.c.bf16 %v1335, %v1335
        %v1344 = vpack.c.bf16 %v1336, %v1336
        %v1345 = vpack.c.bf16 %v1337, %v1337
        %v1346 = vpack.c.bf16 %v1338, %v1338
        %v1347 = vpack.c.bf16 %v1339, %v1339
        %v1348 = vpack.c.bf16 %v1340, %v1340
        %v1349 = vpack.c.bf16 %v1341, %v1341
        %v1350 = vpack.c.bf16 %v1342, %v1342
        %1351 = vrot.lane.b32.xlu0 %v1064, 64
        %v1352 = vpop.permute.xlu0 %1351
        %v1354 = vsel %vm1067, %v1343, 0
        %vm1356 = vcmask 1043456
        %v1358 = vsel %vm1356, %v1352, 0
        %1360 = vmatpush.bf16.msra.mxu0 0
        %1361 = vmatpush.bf16.msra.mxu0 0
        %1362 = vmatpush.bf16.msra.mxu0 0
        %1363 = vmatpush.bf16.msra.mxu0 0
        %1364 = vmatpush.bf16.msra.mxu0 0
        %1365 = vmatpush.bf16.msra.mxu0 0
        %1366 = vmatpush.bf16.msra.mxu0 0
        %1367 = vmatpush.bf16.msra.mxu0 %v1358
        %1368 = vmatmul.bf16.gmra.mxu0 %v1354
        %v1369 = vpop.f32.mrf.mxu0
        %v1370 = vadd.f32 0.0, %v1369
        %v1371 = vpop.f32.mrf.mxu0
        %1372 = vdwg.mxu0
        %1373 = vrot.lane.b32.xlu0 %v1089, 64
        %v1374 = vpop.permute.xlu0 %1373
        %v1376 = vsel %vm1067, %v1344, 0
        %v1379 = vsel %vm1356, %v1374, 0
        %1381 = vmatpush.bf16.msra.mxu0 0
        %1382 = vmatpush.bf16.msra.mxu0 0
        %1383 = vmatpush.bf16.msra.mxu0 0
        %1384 = vmatpush.bf16.msra.mxu0 0
        %1385 = vmatpush.bf16.msra.mxu0 0
        %1386 = vmatpush.bf16.msra.mxu0 0
        %1387 = vmatpush.bf16.msra.mxu0 0
        %1388 = vmatpush.bf16.msra.mxu0 %v1379
        %1389 = vmatmul.bf16.gmra.mxu0 %v1376
        %v1390 = vpop.f32.mrf.mxu0
        %v1391 = vadd.f32 0.0, %v1390
        %v1392 = vpop.f32.mrf.mxu0
        %1393 = vdwg.mxu0
        %1394 = vrot.lane.b32.xlu0 %v1113, 64
        %v1395 = vpop.permute.xlu0 %1394
        %v1397 = vsel %vm1067, %v1345, 0
        %v1400 = vsel %vm1356, %v1395, 0
        %1402 = vmatpush.bf16.msra.mxu0 0
        %1403 = vmatpush.bf16.msra.mxu0 0
        %1404 = vmatpush.bf16.msra.mxu0 0
        %1405 = vmatpush.bf16.msra.mxu0 0
        %1406 = vmatpush.bf16.msra.mxu0 0
        %1407 = vmatpush.bf16.msra.mxu0 0
        %1408 = vmatpush.bf16.msra.mxu0 0
        %1409 = vmatpush.bf16.msra.mxu0 %v1400
        %1410 = vmatmul.bf16.gmra.mxu0 %v1397
        %v1411 = vpop.f32.mrf.mxu0
        %v1412 = vadd.f32 0.0, %v1411
        %v1413 = vpop.f32.mrf.mxu0
        %1414 = vdwg.mxu0
        %1415 = vrot.lane.b32.xlu0 %v1137, 64
        %v1416 = vpop.permute.xlu0 %1415
        %v1418 = vsel %vm1067, %v1346, 0
        %v1421 = vsel %vm1356, %v1416, 0
        %1423 = vmatpush.bf16.msra.mxu0 0
        %1424 = vmatpush.bf16.msra.mxu0 0
        %1425 = vmatpush.bf16.msra.mxu0 0
        %1426 = vmatpush.bf16.msra.mxu0 0
        %1427 = vmatpush.bf16.msra.mxu0 0
        %1428 = vmatpush.bf16.msra.mxu0 0
        %1429 = vmatpush.bf16.msra.mxu0 0
        %1430 = vmatpush.bf16.msra.mxu0 %v1421
        %1431 = vmatmul.bf16.gmra.mxu0 %v1418
        %v1432 = vpop.f32.mrf.mxu0
        %v1433 = vadd.f32 0.0, %v1432
        %v1434 = vpop.f32.mrf.mxu0
        %1435 = vdwg.mxu0
        %1436 = vrot.lane.b32.xlu0 %v1161, 64
        %v1437 = vpop.permute.xlu0 %1436
        %v1439 = vsel %vm1067, %v1347, 0
        %v1442 = vsel %vm1356, %v1437, 0
        %1444 = vmatpush.bf16.msra.mxu0 0
        %1445 = vmatpush.bf16.msra.mxu0 0
        %1446 = vmatpush.bf16.msra.mxu0 0
        %1447 = vmatpush.bf16.msra.mxu0 0
        %1448 = vmatpush.bf16.msra.mxu0 0
        %1449 = vmatpush.bf16.msra.mxu0 0
        %1450 = vmatpush.bf16.msra.mxu0 0
        %1451 = vmatpush.bf16.msra.mxu0 %v1442
        %1452 = vmatmul.bf16.gmra.mxu0 %v1439
        %v1453 = vpop.f32.mrf.mxu0
        %v1454 = vadd.f32 0.0, %v1453
        %v1455 = vpop.f32.mrf.mxu0
        %1456 = vdwg.mxu0
        %1457 = vrot.lane.b32.xlu0 %v1185, 64
        %v1458 = vpop.permute.xlu0 %1457
        %v1460 = vsel %vm1067, %v1348, 0
        %v1463 = vsel %vm1356, %v1458, 0
        %1465 = vmatpush.bf16.msra.mxu0 0
        %1466 = vmatpush.bf16.msra.mxu0 0
        %1467 = vmatpush.bf16.msra.mxu0 0
        %1468 = vmatpush.bf16.msra.mxu0 0
        %1469 = vmatpush.bf16.msra.mxu0 0
        %1470 = vmatpush.bf16.msra.mxu0 0
        %1471 = vmatpush.bf16.msra.mxu0 0
        %1472 = vmatpush.bf16.msra.mxu0 %v1463
        %1473 = vmatmul.bf16.gmra.mxu0 %v1460
        %v1474 = vpop.f32.mrf.mxu0
        %v1475 = vadd.f32 0.0, %v1474
        %v1476 = vpop.f32.mrf.mxu0
        %1477 = vdwg.mxu0
        %1478 = vrot.lane.b32.xlu0 %v1209, 64
        %v1479 = vpop.permute.xlu0 %1478
        %v1481 = vsel %vm1067, %v1349, 0
        %v1484 = vsel %vm1356, %v1479, 0
        %1486 = vmatpush.bf16.msra.mxu0 0
        %1487 = vmatpush.bf16.msra.mxu0 0
        %1488 = vmatpush.bf16.msra.mxu0 0
        %1489 = vmatpush.bf16.msra.mxu0 0
        %1490 = vmatpush.bf16.msra.mxu0 0
        %1491 = vmatpush.bf16.msra.mxu0 0
        %1492 = vmatpush.bf16.msra.mxu0 0
        %1493 = vmatpush.bf16.msra.mxu0 %v1484
        %1494 = vmatmul.bf16.gmra.mxu0 %v1481
        %v1495 = vpop.f32.mrf.mxu0
        %v1496 = vadd.f32 0.0, %v1495
        %v1497 = vpop.f32.mrf.mxu0
        %1498 = vdwg.mxu0
        %1499 = vrot.lane.b32.xlu0 %v1233, 64
        %v1500 = vpop.permute.xlu0 %1499
        %v1502 = vsel %vm1067, %v1350, 0
        %v1505 = vsel %vm1356, %v1500, 0
        %1507 = vmatpush.bf16.msra.mxu0 0
        %1508 = vmatpush.bf16.msra.mxu0 0
        %1509 = vmatpush.bf16.msra.mxu0 0
        %1510 = vmatpush.bf16.msra.mxu0 0
        %1511 = vmatpush.bf16.msra.mxu0 0
        %1512 = vmatpush.bf16.msra.mxu0 0
        %1513 = vmatpush.bf16.msra.mxu0 0
        %1514 = vmatpush.bf16.msra.mxu0 %v1505
        %1515 = vmatmul.bf16.gmra.mxu0 %v1502
        %v1516 = vpop.f32.mrf.mxu0
        %v1517 = vadd.f32 0.0, %v1516
        %v1518 = vpop.f32.mrf.mxu0
        %1519 = vdwg.mxu0
        %v1520 = vpack.c.bf16 %v1370, %v1370
        %v1521 = vpack.c.bf16 %v1391, %v1391
        %v1522 = vpack.c.bf16 %v1412, %v1412
        %v1523 = vpack.c.bf16 %v1433, %v1433
        %v1524 = vpack.c.bf16 %v1454, %v1454
        %v1525 = vpack.c.bf16 %v1475, %v1475
        %v1526 = vpack.c.bf16 %v1496, %v1496
        %v1527 = vpack.c.bf16 %v1517, %v1517
        %v1528 = vld [vmem:[%s846] sm:$0xf]
        %v1529 = vld [vmem:[%s846 + $0x4] sm:$0xf]
        %v1530 = vld [vmem:[%s846 + $0x8] sm:$0xf]
        %v1531 = vld [vmem:[%s846 + $0xc] sm:$0xf]
        %v1534 = vunpack.c.l.b16 %v1520
        %v1535 = vunpack.c.l.b16 %v1521
        %v1536 = vpack.c.b16 %v1535, %v1534
        %v1538 = vsel %vm1067, %v1536, 0
        %v1541 = vsel %vm1356, %v1528, 0
        %1543 = vmatpush.bf16.msra.mxu0 0
        %1544 = vmatpush.bf16.msra.mxu0 0
        %1545 = vmatpush.bf16.msra.mxu0 0
        %1546 = vmatpush.bf16.msra.mxu0 0
        %1547 = vmatpush.bf16.msra.mxu0 0
        %1548 = vmatpush.bf16.msra.mxu0 0
        %1549 = vmatpush.bf16.msra.mxu0 0
        %1550 = vmatpush.bf16.msra.mxu0 %v1541
        %1551 = vmatmul.bf16.gmra.mxu0 %v1538
        %v1552 = vpop.f32.mrf.mxu0
        %v1553 = vadd.f32 0.0, %v1552
        %v1554 = vpop.f32.mrf.mxu0
        %v1555 = vadd.f32 0.0, %v1554
        %1556 = vdwg.mxu0
        %v1559 = vunpack.c.l.b16 %v1522
        %v1560 = vunpack.c.l.b16 %v1523
        %v1561 = vpack.c.b16 %v1560, %v1559
        %v1563 = vsel %vm1067, %v1561, 0
        %v1566 = vsel %vm1356, %v1529, 0
        %1568 = vmatpush.bf16.msra.mxu0 0
        %1569 = vmatpush.bf16.msra.mxu0 0
        %1570 = vmatpush.bf16.msra.mxu0 0
        %1571 = vmatpush.bf16.msra.mxu0 0
        %1572 = vmatpush.bf16.msra.mxu0 0
        %1573 = vmatpush.bf16.msra.mxu0 0
        %1574 = vmatpush.bf16.msra.mxu0 0
        %1575 = vmatpush.bf16.msra.mxu0 %v1566
        %1576 = vmatmul.bf16.gmra.mxu0 %v1563
        %v1577 = vpop.f32.mrf.mxu0
        %v1578 = vadd.f32 0.0, %v1577
        %v1579 = vpop.f32.mrf.mxu0
        %v1580 = vadd.f32 0.0, %v1579
        %1581 = vdwg.mxu0
        %v1584 = vunpack.c.l.b16 %v1524
        %v1585 = vunpack.c.l.b16 %v1525
        %v1586 = vpack.c.b16 %v1585, %v1584
        %v1588 = vsel %vm1067, %v1586, 0
        %v1591 = vsel %vm1356, %v1530, 0
        %1593 = vmatpush.bf16.msra.mxu0 0
        %1594 = vmatpush.bf16.msra.mxu0 0
        %1595 = vmatpush.bf16.msra.mxu0 0
        %1596 = vmatpush.bf16.msra.mxu0 0
        %1597 = vmatpush.bf16.msra.mxu0 0
        %1598 = vmatpush.bf16.msra.mxu0 0
        %1599 = vmatpush.bf16.msra.mxu0 0
        %1600 = vmatpush.bf16.msra.mxu0 %v1591
        %1601 = vmatmul.bf16.gmra.mxu0 %v1588
        %v1602 = vpop.f32.mrf.mxu0
        %v1603 = vadd.f32 0.0, %v1602
        %v1604 = vpop.f32.mrf.mxu0
        %v1605 = vadd.f32 0.0, %v1604
        %1606 = vdwg.mxu0
        %v1609 = vunpack.c.l.b16 %v1526
        %v1610 = vunpack.c.l.b16 %v1527
        %v1611 = vpack.c.b16 %v1610, %v1609
        %v1613 = vsel %vm1067, %v1611, 0
        %v1616 = vsel %vm1356, %v1531, 0
        %1618 = vmatpush.bf16.msra.mxu0 0
        %1619 = vmatpush.bf16.msra.mxu0 0
        %1620 = vmatpush.bf16.msra.mxu0 0
        %1621 = vmatpush.bf16.msra.mxu0 0
        %1622 = vmatpush.bf16.msra.mxu0 0
        %1623 = vmatpush.bf16.msra.mxu0 0
        %1624 = vmatpush.bf16.msra.mxu0 0
        %1625 = vmatpush.bf16.msra.mxu0 %v1616
        %1626 = vmatmul.bf16.gmra.mxu0 %v1613
        %v1627 = vpop.f32.mrf.mxu0
        %v1628 = vadd.f32 0.0, %v1627
        %v1629 = vpop.f32.mrf.mxu0
        %v1630 = vadd.f32 0.0, %v1629
        %1631 = vdwg.mxu0
        %v1632 = vsel %vm968, %v1553, 0.0
        %v1633 = vsel %vm968, %v1578, 0.0
        %v1634 = vadd.f32 %v1632, %v1633
        %v1635 = vsel %vm968, %v1603, 0.0
        %v1636 = vadd.f32 %v1634, %v1635
        %v1637 = vsel %vm968, %v1628, 0.0
        %v1638 = vadd.f32 %v1636, %v1637
        %v1639 = vsel %vm968, %v1555, 0.0
        %v1640 = vsel %vm968, %v1580, 0.0
        %v1641 = vadd.f32 %v1639, %v1640
        %v1642 = vsel %vm968, %v1605, 0.0
        %v1643 = vadd.f32 %v1641, %v1642
        %v1644 = vsel %vm968, %v1630, 0.0
        %v1645 = vadd.f32 %v1643, %v1644
        %v1646 = vld [vmem:[%s849] sm:$0x1]
        %v1648 = vperm.slane %v1646, 0
        %v1650 = vadd.f32 %v1638, %v1648
        %v1651 = vadd.f32 %v1645, %v1648
        %v1652 = vadd.f32 %v1650, %v945
        %v1653 = vadd.f32 %v1651, %v946
        %v1654 = vld [vmem:[%s852] sm:$0x1]
        %v1655 = vld [vmem:[%s726] sm:$0x1]
        %v1656 = vsel %vm968, %v1652, 0.0
        %1657 = vadd.xlane.f32.xlu0 %v1656
        %v1658 = vpop.xlane.xlu0 %1657
        %v1659 = vsel %vm968, %v1653, 0.0
        %1660 = vadd.xlane.f32.xlu0 %v1659
        %v1661 = vpop.xlane.xlu0 %1660
        %v1662 = vrcp.pop 32.0
        %v1663 = vmul.f32 32.0, %v1662
        %v1664 = vsub.f32 1.0, %v1663
        %v1665 = vmul.f32 %v1662, %v1664
        %v1666 = vadd.f32 %v1662, %v1665
        %vm1667 = vweird.f32 %v1662
        %v1668 = vsel %vm1667, %v1662, %v1666
        %v1669 = vmul.f32 %v1658, %v1668
        %v1670 = vmul.f32 %v1661, %v1668
        %v1671 = vsub.f32 %v1652, %v1669
        %v1672 = vsub.f32 %v1653, %v1670
        %v1673 = vmul.f32 %v1671, %v1671
        %v1674 = vmul.f32 %v1672, %v1672
        %v1675 = vsel %vm968, %v1673, 0.0
        %1676 = vadd.xlane.f32.xlu0 %v1675
        %v1677 = vpop.xlane.xlu0 %1676
        %v1678 = vsel %vm968, %v1674, 0.0
        %1679 = vadd.xlane.f32.xlu0 %v1678
        %v1680 = vpop.xlane.xlu0 %1679
        %v1681 = vmul.f32 %v1677, %v1668
        %v1682 = vmul.f32 %v1680, %v1668
        %v1683 = vadd.f32 %v1681, 1e-05
        %v1684 = vadd.f32 %v1682, 1e-05
        %v1685 = vrsqrt.pop %v1683
        %v1686 = vmul.f32 %v1685, %v1683
        %v1687 = vmul.f32 %v1686, %v1685
        %v1688 = vmul.f32 0.5, %v1687
        %v1689 = vsub.f32 1.5, %v1688
        %v1690 = vmul.f32 %v1685, %v1689
        %vm1691 = vweird.f32 %v1683
        %vm1692 = vweird.f32 %v1685
        %vm1693 = vmor %vm1691, %vm1692
        %v1694 = vsel %vm1693, %v1685, %v1690
        %v1695 = vrsqrt.pop %v1684
        %v1696 = vmul.f32 %v1695, %v1684
        %v1697 = vmul.f32 %v1696, %v1695
        %v1698 = vmul.f32 0.5, %v1697
        %v1699 = vsub.f32 1.5, %v1698
        %v1700 = vmul.f32 %v1695, %v1699
        %vm1701 = vweird.f32 %v1684
        %vm1702 = vweird.f32 %v1695
        %vm1703 = vmor %vm1701, %vm1702
        %v1704 = vsel %vm1703, %v1695, %v1700
        %v1705 = vmul.f32 %v1671, %v1694
        %v1706 = vmul.f32 %v1672, %v1704
        %v1708 = vperm.slane %v1654, 0
        %v1710 = vmul.f32 %v1705, %v1708
        %v1711 = vmul.f32 %v1706, %v1708
        %v1713 = vperm.slane %v1655, 0
        %v1715 = vadd.f32 %v1710, %v1713
        %v1716 = vadd.f32 %v1711, %v1713
        %v1717 = vpack.c.bf16 %v1716, %v1715
        %v1718 = vld [vmem:[%s857] sm:$0xf]
        %v1719 = vld [vmem:[%s857 + $0x4] sm:$0xf]
        %v1720 = vld [vmem:[%s857 + $0x8] sm:$0xf]
        %v1721 = vld [vmem:[%s857 + $0xc] sm:$0xf]
        %v1722 = vld [vmem:[%s860] sm:$0x1]
        %v1724 = vperm.slane %v1722, 0
        %v1730 = vunpack.c.l.b16 %v1718
        %v1731 = vunpack.c.l.b16 %v1719
        %v1732 = vunpack.c.l.b16 %v1720
        %v1733 = vunpack.c.l.b16 %v1721
        %v1734 = vpack.c.b16 %v1731, %v1730
        %v1735 = vpack.c.b16 %v1733, %v1732
        %v1739 = vsel %vm968, %v1717, 0
        %1741 = vmatpush.bf16.msra.mxu0 0
        %1742 = vmatpush.bf16.msra.mxu0 0
        %1743 = vmatpush.bf16.msra.mxu0 0
        %1744 = vmatpush.bf16.msra.mxu0 0
        %1745 = vmatpush.bf16.msra.mxu0 0
        %1746 = vmatpush.bf16.msra.mxu0 0
        %1747 = vmatpush.bf16.msra.mxu0 %v1735
        %1748 = vmatpush.bf16.msra.mxu0 %v1734
        %1749 = vmatmul.bf16.gmra.mxu0 %v1739
        %v1750 = vpop.f32.mrf.mxu0
        %v1751 = vadd.f32 %v1724, %v1750
        %v1752 = vpop.f32.mrf.mxu0
        %v1753 = vadd.f32 %v1724, %v1752
        %1754 = vdwg.mxu0
        %v1755 = vmul.f32 %v1751, 0.5
        %v1756 = vmul.f32 %v1753, 0.5
        %v1757 = vmul.f32 %v1751, 0.044715
        %v1758 = vmul.f32 %v1753, 0.044715
        %v1759 = vmul.f32 %v1757, %v1751
        %v1760 = vmul.f32 %v1758, %v1753
        %v1761 = vmul.f32 %v1759, %v1751
        %v1762 = vmul.f32 %v1760, %v1753
        %v1763 = vadd.f32 %v1751, %v1761
        %v1764 = vadd.f32 %v1753, %v1762
        %v1765 = vmul.f32 %v1763, 0.7978846
        %v1766 = vmul.f32 %v1764, 0.7978846
        %v1767 = vtanh.pop %v1765
        %v1768 = vtanh.pop %v1766
        %v1769 = vadd.f32 %v1767, 1.0
        %v1770 = vadd.f32 %v1768, 1.0
        %v1771 = vmul.f32 %v1755, %v1769
        %v1772 = vmul.f32 %v1756, %v1770
        %v1773 = vpack.c.bf16 %v1772, %v1771
        %v1774 = vld [vmem:[%s865] sm:$0xf]
        %v1775 = vld [vmem:[%s865 + $0x4] sm:$0xf]
        %v1776 = vld [vmem:[%s865 + $0x8] sm:$0xf]
        %v1777 = vld [vmem:[%s865 + $0xc] sm:$0xf]
        %v1778 = vld [vmem:[%s865 + $0x10] sm:$0xf]
        %v1779 = vld [vmem:[%s865 + $0x14] sm:$0xf]
        %v1780 = vld [vmem:[%s865 + $0x18] sm:$0xf]
        %v1781 = vld [vmem:[%s865 + $0x1c] sm:$0xf]
        %v1782 = vld [vmem:[%s868] sm:$0x1]
        %v1784 = vperm.slane %v1782, 0
        %v1794 = vunpack.c.l.b16 %v1774
        %v1795 = vunpack.c.l.b16 %v1775
        %v1796 = vunpack.c.l.b16 %v1776
        %v1797 = vunpack.c.l.b16 %v1777
        %v1798 = vunpack.c.l.b16 %v1778
        %v1799 = vunpack.c.l.b16 %v1779
        %v1800 = vunpack.c.l.b16 %v1780
        %v1801 = vunpack.c.l.b16 %v1781
        %v1802 = vpack.c.b16 %v1795, %v1794
        %v1803 = vpack.c.b16 %v1797, %v1796
        %v1804 = vpack.c.b16 %v1799, %v1798
        %v1805 = vpack.c.b16 %v1801, %v1800
        %vm1810 = vcmask 523264
        %v1812 = vsel %vm1810, %v1773, 0
        %1814 = vmatpush.bf16.msra.mxu0 0
        %1815 = vmatpush.bf16.msra.mxu0 0
        %1816 = vmatpush.bf16.msra.mxu0 0
        %1817 = vmatpush.bf16.msra.mxu0 0
        %1818 = vmatpush.bf16.msra.mxu0 %v1805
        %1819 = vmatpush.bf16.msra.mxu0 %v1804
        %1820 = vmatpush.bf16.msra.mxu0 %v1803
        %1821 = vmatpush.bf16.msra.mxu0 %v1802
        %1822 = vmatmul.bf16.gmra.mxu0 %v1812
        %v1823 = vpop.f32.mrf.mxu0
        %v1824 = vadd.f32 %v1784, %v1823
        %v1825 = vpop.f32.mrf.mxu0
        %v1826 = vadd.f32 %v1784, %v1825
        %1827 = vdwg.mxu0
        %v1828 = vadd.f32 %v1824, %v1715
        %v1829 = vadd.f32 %v1826, %v1716
        %v1830 = vld [vmem:[%s871] sm:$0x1]
        %v1831 = vld [vmem:[%s735] sm:$0x1]
        %v1832 = vsel %vm968, %v1828, 0.0
        %1833 = vadd.xlane.f32.xlu0 %v1832
        %v1834 = vpop.xlane.xlu0 %1833
        %v1835 = vsel %vm968, %v1829, 0.0
        %1836 = vadd.xlane.f32.xlu0 %v1835
        %v1837 = vpop.xlane.xlu0 %1836
        %v1838 = vmul.f32 %v1834, %v1668
        %v1839 = vmul.f32 %v1837, %v1668
        %v1840 = vsub.f32 %v1828, %v1838
        %v1841 = vsub.f32 %v1829, %v1839
        %v1842 = vmul.f32 %v1840, %v1840
        %v1843 = vmul.f32 %v1841, %v1841
        %v1844 = vsel %vm968, %v1842, 0.0
        %1845 = vadd.xlane.f32.xlu0 %v1844
        %v1846 = vpop.xlane.xlu0 %1845
        %v1847 = vsel %vm968, %v1843, 0.0
        %1848 = vadd.xlane.f32.xlu0 %v1847
        %v1849 = vpop.xlane.xlu0 %1848
        %v1850 = vmul.f32 %v1846, %v1668
        %v1851 = vmul.f32 %v1849, %v1668
        %v1852 = vadd.f32 %v1850, 1e-05
        %v1853 = vadd.f32 %v1851, 1e-05
        %v1854 = vrsqrt.pop %v1852
        %v1855 = vmul.f32 %v1854, %v1852
        %v1856 = vmul.f32 %v1855, %v1854
        %v1857 = vmul.f32 0.5, %v1856
        %v1858 = vsub.f32 1.5, %v1857
        %v1859 = vmul.f32 %v1854, %v1858
        %vm1860 = vweird.f32 %v1852
        %vm1861 = vweird.f32 %v1854
        %vm1862 = vmor %vm1860, %vm1861
        %v1863 = vsel %vm1862, %v1854, %v1859
        %v1864 = vrsqrt.pop %v1853
        %v1865 = vmul.f32 %v1864, %v1853
        %v1866 = vmul.f32 %v1865, %v1864
        %v1867 = vmul.f32 0.5, %v1866
        %v1868 = vsub.f32 1.5, %v1867
        %v1869 = vmul.f32 %v1864, %v1868
        %vm1870 = vweird.f32 %v1853
        %vm1871 = vweird.f32 %v1864
        %vm1872 = vmor %vm1870, %vm1871
        %v1873 = vsel %vm1872, %v1864, %v1869
        %v1874 = vmul.f32 %v1840, %v1863
        %v1875 = vmul.f32 %v1841, %v1873
        %v1877 = vperm.slane %v1830, 0
        %v1879 = vmul.f32 %v1874, %v1877
        %v1880 = vmul.f32 %v1875, %v1877
        %v1882 = vperm.slane %v1831, 0
        %v1884 = vadd.f32 %v1879, %v1882
        %v1885 = vadd.f32 %v1880, %v1882
        %1886 = vst.msk [vmem:[#allocation2] sm:$0xff] %vm968, %v1884
        %1887 = vst.msk [vmem:[#allocation2 + $0x8] sm:$0xff] %vm968, %v1885
        %p1888 = scmp.eq.s32.totalorder %s34, 1
        // Predicated region
        $region125: #{tpu_custom_call.1} parent=99 // pred_check
          %p1889 = pneg %p1888
        $region126: #{tpu_custom_call.1} parent=99 // pred_check_branch
          %1891 = sbr.rel (%p1889) target = $region128
        $region127: #{tpu_custom_call.1} parent=99 // pred_region
          %v1892 = vpack.c.bf16 %v1884, %v1884
          %v1893 = vpack.c.bf16 %v1885, %v1885
          %v1894 = vld [vmem:[#allocation10] sm:$0xf]
          %v1895 = vld [vmem:[#allocation10 + $0x4] sm:$0xf]
          %v1896 = vld [vmem:[#allocation10 + $0x8] sm:$0xf]
          %v1897 = vld [vmem:[#allocation10 + $0xc] sm:$0xf]
          %v1898 = vld [vmem:[%s17] sm:$0x1]
          %v1900 = vperm.slane %v1898, 0
          %v1904 = vunpack.c.l.b16 %v1892
          %v1905 = vunpack.c.l.b16 %v1893
          %v1906 = vrot.slane %v1905, 7
          %vm1907 = vcmask 1041409
          %v1908 = vsel %vm1907, %v1906, %v1904
          %v1909 = vpack.c.b16 %v1908, %v1908
          %v1914 = vunpack.c.l.b16 %v1894
          %v1915 = vunpack.c.l.b16 %v1895
          %v1916 = vunpack.c.l.b16 %v1896
          %v1917 = vunpack.c.l.b16 %v1897
          %v1918 = vpack.c.b16 %v1915, %v1914
          %v1919 = vpack.c.b16 %v1917, %v1916
          %v1923 = vsel %vm968, %v1909, 0
          %1925 = vmatpush.bf16.msra.mxu0 0
          %1926 = vmatpush.bf16.msra.mxu0 0
          %1927 = vmatpush.bf16.msra.mxu0 0
          %1928 = vmatpush.bf16.msra.mxu0 0
          %1929 = vmatpush.bf16.msra.mxu0 0
          %1930 = vmatpush.bf16.msra.mxu0 0
          %1931 = vmatpush.bf16.msra.mxu0 %v1919
          %1932 = vmatpush.bf16.msra.mxu0 %v1918
          %1933 = vmatmul.bf16.gmra.mxu0 %v1923
          %v1934 = vpop.f32.mrf.mxu0
          %v1935 = vadd.f32 %v1900, %v1934
          %v1936 = vpop.f32.mrf.mxu0
          %1937 = vdwg.mxu0
          %v1938 = vtanh.pop %v1935
          %v1939 = vpack.c.bf16 %v1938, %v1938
          %v1940 = vld [vmem:[%s18] sm:$0xf]
          %v1941 = vld [vmem:[%s18 + $0x4] sm:$0xf]
          %v1942 = vld [vmem:[%s18 + $0x8] sm:$0xf]
          %v1943 = vld [vmem:[%s18 + $0xc] sm:$0xf]
          %v1944 = vld [vmem:[%s19] sm:$0x1]
          %v1946 = vperm.slane %v1944, 0
          %v1952 = vunpack.c.l.b16 %v1940
          %v1953 = vunpack.c.l.b16 %v1941
          %v1954 = vunpack.c.l.b16 %v1942
          %v1955 = vunpack.c.l.b16 %v1943
          %v1956 = vpack.c.b16 %v1953, %v1952
          %v1957 = vpack.c.b16 %v1955, %v1954
          %v1961 = vsel %vm968, %v1939, 0
          %1963 = vmatpush.bf16.msra.mxu0 0
          %1964 = vmatpush.bf16.msra.mxu0 0
          %1965 = vmatpush.bf16.msra.mxu0 0
          %1966 = vmatpush.bf16.msra.mxu0 0
          %1967 = vmatpush.bf16.msra.mxu0 0
          %1968 = vmatpush.bf16.msra.mxu0 0
          %1969 = vmatpush.bf16.msra.mxu0 %v1957
          %1970 = vmatpush.bf16.msra.mxu0 %v1956
          %1971 = vmatmul.bf16.gmra.mxu0 %v1961
          %v1972 = vpop.f32.mrf.mxu0
          %v1973 = vadd.f32 %v1946, %v1972
          %v1974 = vpop.f32.mrf.mxu0
          %1975 = vdwg.mxu0
          %vm1976 = vcmask 9216
          %1977 = vst.msk [vmem:[#allocation11] sm:$0x3] %vm1976, %v1973
        $region128: #{tpu_custom_call.1} parent=99 // pred_fallthru
          _
        // Predicated region
        $region129: #{tpu_custom_call.1} parent=99 // pred_check
          %p1978 = pneg %p527
        $region130: #{tpu_custom_call.1} parent=99 // pred_check_branch
          %1980 = sbr.rel (%p1978) target = $region132
        $region131: #{tpu_custom_call.1} parent=99 // pred_region
          %1982 = vsyncadd [#allocation5], 0
          %s1984 = sshll.u32 [#allocation11], 4
          %s1985 = int_to_ptr.vmem [resolvable:$true] %s1984
          %s1986 = sshll.u32 %s20, 4
          %s1987 = int_to_ptr.hbm [resolvable:$true] %s1986
          %1989 = dma.vmem_to_hbm [thread:$0]  %s1985, 32, %s1987, [#allocation5]
        $region132: #{tpu_custom_call.1} parent=99 // pred_fallthru
          _
        // Predicated region
        $region133: #{tpu_custom_call.1} parent=99 // pred_check
          %p1990 = pneg %p527
        $region134: #{tpu_custom_call.1} parent=99 // pred_check_branch
          %1992 = sbr.rel (%p1990) target = $region136
        $region135: #{tpu_custom_call.1} parent=99 // pred_region
          %1994 = dma.done [#allocation5], 32
        $region136: #{tpu_custom_call.1} parent=99 // pred_fallthru
          _
      $region100: #{tpu_custom_call.1} parent=5 // pred_fallthru
        _
      %p1995 = scmp.le.s32.totalorder 2, %s29
      // Predicated region
      $region137: #{tpu_custom_call.1} parent=5 // pred_check
        %p1996 = pneg %p1995
      $region138: #{tpu_custom_call.1} parent=5 // pred_check_branch
        %1998 = sbr.rel (%p1996) target = $region140
      $region139: #{tpu_custom_call.1} parent=5 // pred_region
        %s1999 = ssub.s32 %s29, 2
      $region140: #{tpu_custom_call.1} parent=5 // pred_fallthru
        _
    $region6: #{tpu_custom_call.1} parent=1 // loop_footer
      %s33 = sadd.s32 1, %s29
    $region7: #{tpu_custom_call.1} parent=1 // loop_footer_branch
      %28 = sbr.rel target = $region3
    $region8: #{tpu_custom_call.1} parent=1 // loop_exit
      _
    %2000 = vsyncpa [#allocation4], 1
    %s2001 = scalar_lea.sflag [#allocation4], 1
    %2002 = vsyncpa %s2001, 1
    %2003 = vsyncpa [#allocation7], 1
    %2004 = vsyncpa [#allocation5], 1
    %s2005 = scalar_lea.sflag [#allocation5], 1
    %2006 = vsyncpa %s2005, 1

</llo_original>
